<compile_context>
chip_gen: v6e
topology: v6e:2x2x1
jax: 0.10.0
libtpu: 0.0.40
codegen_flags: <defaults>
</compile_context>

<pallas_src>
import functools
import numpy as np
import jax
import jax.numpy as jnp
from jax.experimental import pallas as pl
from jax.experimental.pallas import tpu as pltpu

LINEAR_KERNEL = np.array([1 / 8, 3 / 8, 3 / 8, 1 / 8], dtype=np.float32)
EPS = 1e-5


def _group_norm(x, P, gamma, beta, inv_n):
    # x: (C, L) f32; P: (C, C) same-group indicator; gamma/beta: (C, 1); inv_n = 1/(group*L).
    s1 = jnp.sum(x, axis=-1, keepdims=True)                       # (C, 1)   lane reduction
    s2 = jnp.sum(x * x, axis=-1, keepdims=True)                   # (C, 1)
    mean = jnp.dot(P, s1, preferred_element_type=jnp.float32) * inv_n   # group mean per chan
    ex2 = jnp.dot(P, s2, preferred_element_type=jnp.float32) * inv_n
    var = ex2 - mean * mean
    inv = jax.lax.rsqrt(var + EPS)
    return (x - mean) * inv * gamma + beta


def _silu(x, approx):
    if approx:
        # sigmoid = 1 / (1 + exp(-x)); exp and the approx reciprocal both live on the EUP slot.
        return x * pl.reciprocal(1.0 + jnp.exp(-x), approx=True)
    return x * jax.nn.sigmoid(x)


def _conv3(h, w3, compute_dtype):
    # h: (C, L) f32; w3: (Co, 3C) in compute_dtype with tap order [t-1, t, t+1].
    # Zero-padded "same" conv: roll is circular, so mask the wrapped boundary column.
    C, L = h.shape
    col = jax.lax.broadcasted_iota(jnp.int32, (C, L), 1)
    zero = jnp.zeros_like(h)
    hm = jnp.where(col == 0, zero, pltpu.roll(h, shift=1, axis=1))          # h[:, t-1]
    hp = jnp.where(col == L - 1, zero, pltpu.roll(h, shift=L - 1, axis=1))  # h[:, t+1]
    h3 = jnp.concatenate([hm, h, hp], axis=0).astype(compute_dtype)         # (3C, L)
    return jnp.dot(w3, h3, preferred_element_type=jnp.float32)              # (Co, L) f32


def _downsample_block_kernel(x_ref, wres_ref, bres_ref,
                             g1_ref, be1_ref, w1_ref,
                             g2_ref, be2_ref, w2_ref,
                             p1_ref, p2_ref, md_ref,
                             o_ref, *, inv_n1, inv_n2, compute_dtype, approx_silu):
    x = x_ref[0].astype(jnp.float32)                                        # (Ci, L)

    # residual 1x1 conv (with bias)
    residual = (jnp.dot(wres_ref[...], x.astype(compute_dtype),
                        preferred_element_type=jnp.float32)
                + bres_ref[...])                                            # (Co, L)

    # GN1 -> SiLU -> conv1 (k=3, pad=1, no bias)
    h = _silu(_group_norm(x, p1_ref[...], g1_ref[...], be1_ref[...], inv_n1), approx_silu)
    h = _conv3(h, w1_ref[...], compute_dtype)

    # GN2 -> SiLU -> (dropout p=0: no-op) -> conv2 (k=3, pad=1, no bias)
    h = _silu(_group_norm(h, p2_ref[...], g2_ref[...], be2_ref[...], inv_n2), approx_silu)
    h = _conv3(h, w2_ref[...], compute_dtype)

    y = h + residual                                                        # (Co, L) f32

    # Downsample1d('linear'): reflect pad 1, depthwise [1/8,3/8,3/8,1/8], stride 4.
    o_ref[0] = jnp.dot(y.astype(compute_dtype), md_ref[...],
                       preferred_element_type=jnp.float32).astype(o_ref.dtype)


def downsample_block_1d(x, params, *, num_groups=32, compute_dtype=jnp.bfloat16):
    B, Ci, L = x.shape
    Co = params["w_res"].shape[0]
    assert L % 4 == 0
    L_pad = L + 2                       # reflect pad = kernel_len//2 - 1 = 1 per side
    L_out = (L_pad - 4) // 4 + 1        # == L // 4
    g1 = Ci // num_groups
    g2 = Co // num_groups

    # same-group indicator matrices for the tiny GroupNorm group-broadcast dot
    def group_indicator(C, g):
        gid = np.arange(C) // g
        return jnp.asarray((gid[:, None] == gid[None, :]).astype(np.float32))

    P1 = group_indicator(Ci, g1)
    P2 = group_indicator(Co, g2)

    # downsample matrix (L, L_out): reflect pad 1 + depthwise linear kernel + stride 4
    M = np.zeros((L, L_out), np.float32)
    for i in range(L_out):
        for k in range(4):
            j = 4 * i + k
            if j == 0:
                src = 1
            elif j == L_pad - 1:
                src = L - 2
            else:
                src = j - 1
            M[src, i] += LINEAR_KERNEL[k]
    Md = jnp.asarray(M).astype(compute_dtype)

    # stack the 3 conv taps: (Co, C, 3) -> (Co, 3C), column block k holds tap k (x[t-1+k])
    def stack_taps(w):
        Cout, Cin, _ = w.shape
        return jnp.transpose(w, (0, 2, 1)).reshape(Cout, 3 * Cin).astype(compute_dtype)

    w1s = stack_taps(params["w1"])                              # (Co, 3*Ci)
    w2s = stack_taps(params["w2"])                              # (Co, 3*Co)
    wres = params["w_res"].astype(compute_dtype)                # (Co, Ci)
    bres = params["b_res"].reshape(Co, 1).astype(jnp.float32)
    gam1 = params["gn1_gamma"].reshape(Ci, 1).astype(jnp.float32)
    bet1 = params["gn1_beta"].reshape(Ci, 1).astype(jnp.float32)
    gam2 = params["gn2_gamma"].reshape(Co, 1).astype(jnp.float32)
    bet2 = params["gn2_beta"].reshape(Co, 1).astype(jnp.float32)

    def full(shape):
        return pl.BlockSpec(shape, lambda b, _s=shape: (0,) * len(_s))

    kernel = functools.partial(
        _downsample_block_kernel,
        inv_n1=1.0 / (g1 * L), inv_n2=1.0 / (g2 * L),
        compute_dtype=compute_dtype,
        approx_silu=(compute_dtype != jnp.float32))

    return pl.pallas_call(
        kernel,
        out_shape=jax.ShapeDtypeStruct((B, Co, L_out), x.dtype),
        grid=(B,),
        in_specs=[
            pl.BlockSpec((1, Ci, L), lambda b: (b, 0, 0)),      # x
            full((Co, Ci)), full((Co, 1)),                      # residual conv
            full((Ci, 1)), full((Ci, 1)), full((Co, 3 * Ci)),   # GN1, conv1 (stacked taps)
            full((Co, 1)), full((Co, 1)), full((Co, 3 * Co)),   # GN2, conv2 (stacked taps)
            full((Ci, Ci)), full((Co, Co)),                     # P1, P2 (group indicators)
            full((L, L_out)),                                   # Md (downsample)
        ],
        out_specs=pl.BlockSpec((1, Co, L_out), lambda b: (b, 0, 0)),
        compiler_params=pltpu.CompilerParams(dimension_semantics=("parallel",)),
    )(x, wres, bres, gam1, bet1, w1s, gam2, bet2, w2s, P1, P2, Md)


def ref_forward(x, params, num_groups=32):
    """Pure-JAX f32 reference matching the PyTorch module semantics."""
    Co = params["w_res"].shape[0]

    def gn(h, gamma, beta):
        B, C, L = h.shape
        g = C // num_groups
        hr = h.reshape(B, num_groups, g * L)
        mean = hr.mean(-1, keepdims=True)
        var = ((hr - mean) ** 2).mean(-1, keepdims=True)   # biased variance (torch GN)
        hr = (hr - mean) / jnp.sqrt(var + EPS)
        h = hr.reshape(B, C, L)
        return h * gamma.reshape(1, C, 1) + beta.reshape(1, C, 1)

    silu = lambda v: v * jax.nn.sigmoid(v)
    conv3 = lambda h, w: jax.lax.conv_general_dilated(
        h, w, window_strides=(1,), padding=((1, 1),),
        dimension_numbers=("NCH", "OIH", "NCH"))

    res = jnp.einsum("oc,bcl->bol", params["w_res"], x) + params["b_res"].reshape(1, Co, 1)
    h = conv3(silu(gn(x, params["gn1_gamma"], params["gn1_beta"])), params["w1"])
    h = conv3(silu(gn(h, params["gn2_gamma"], params["gn2_beta"])), params["w2"])
    y = h + res

    y = jnp.pad(y, ((0, 0), (0, 0), (1, 1)), mode="reflect")
    kern = jnp.asarray(LINEAR_KERNEL)
    dw = jnp.zeros((Co, Co, 4), jnp.float32).at[jnp.arange(Co), jnp.arange(Co), :].set(kern)
    return jax.lax.conv_general_dilated(y, dw, window_strides=(4,), padding="VALID",
                                        dimension_numbers=("NCH", "OIH", "NCH"))


if __name__ == "__main__":
    # num_groups=32 requires channels % 32 == 0; L=128 keeps the length dim lane-native.
    B, Ci, Co, L = 2, 32, 64, 128

    key = jax.random.PRNGKey(0)
    keys = jax.random.split(key, 9)
    params = {
        "w_res": 0.1 * jax.random.normal(keys[0], (Co, Ci), jnp.float32),
        "b_res": 0.1 * jax.random.normal(keys[1], (Co,), jnp.float32),
        "w1": 0.1 * jax.random.normal(keys[2], (Co, Ci, 3), jnp.float32),
        "w2": 0.1 * jax.random.normal(keys[3], (Co, Co, 3), jnp.float32),
        "gn1_gamma": 1.0 + 0.1 * jax.random.normal(keys[4], (Ci,), jnp.float32),
        "gn1_beta": 0.1 * jax.random.normal(keys[5], (Ci,), jnp.float32),
        "gn2_gamma": 1.0 + 0.1 * jax.random.normal(keys[6], (Co,), jnp.float32),
        "gn2_beta": 0.1 * jax.random.normal(keys[7], (Co,), jnp.float32),
    }
    x = jax.random.normal(keys[8], (B, Ci, L), jnp.float32)

    ref = jax.block_until_ready(ref_forward(x, params))

    # Exact (f32) path: tight check against the f32 reference.
    out_f32 = jax.block_until_ready(
        downsample_block_1d(x, params, compute_dtype=jnp.float32))
    np.testing.assert_allclose(np.asarray(out_f32), np.asarray(ref), rtol=1e-3, atol=1e-3)

    # Default (bf16 MXU inputs, f32 accumulation) fast path: loose check.
    out_bf16 = jax.block_until_ready(downsample_block_1d(x, params))
    np.testing.assert_allclose(np.asarray(out_bf16), np.asarray(ref), rtol=1e-1, atol=1e-1)

    print("KERNEL_OK")
</pallas_src>

<mosaic_0001>
module attributes {stable_mosaic.version = 11 : i64} {
  func.func @_downsample_block_kernel(%arg0: i32, %arg1: memref<1x32x128xf32, #tpu.memory_space<vmem>>, %arg2: memref<64x32xf32, #tpu.memory_space<vmem>>, %arg3: memref<64x1xf32, #tpu.memory_space<vmem>>, %arg4: memref<32x1xf32, #tpu.memory_space<vmem>>, %arg5: memref<32x1xf32, #tpu.memory_space<vmem>>, %arg6: memref<64x96xf32, #tpu.memory_space<vmem>>, %arg7: memref<64x1xf32, #tpu.memory_space<vmem>>, %arg8: memref<64x1xf32, #tpu.memory_space<vmem>>, %arg9: memref<64x192xf32, #tpu.memory_space<vmem>>, %arg10: memref<32x32xf32, #tpu.memory_space<vmem>>, %arg11: memref<64x64xf32, #tpu.memory_space<vmem>>, %arg12: memref<128x32xf32, #tpu.memory_space<vmem>>, %arg13: memref<1x64x32xf32, #tpu.memory_space<vmem>>) attributes {dimension_semantics = [#tpu.dimension_semantics<parallel>], iteration_bounds = array<i64: 2>, scalar_prefetch = 0 : i64, scratch_operands = 0 : i64, tpu.core_type = #tpu.core_type<tc>, window_params = [{transform_indices = @transform_0, window_bounds = array<i64: 1, 32, 128>}, {pipeline_mode = #tpu.pipeline_mode<synchronous>, transform_indices = @transform_1, window_bounds = array<i64: 64, 32>}, {pipeline_mode = #tpu.pipeline_mode<synchronous>, transform_indices = @transform_2, window_bounds = array<i64: 64, 1>}, {pipeline_mode = #tpu.pipeline_mode<synchronous>, transform_indices = @transform_3, window_bounds = array<i64: 32, 1>}, {pipeline_mode = #tpu.pipeline_mode<synchronous>, transform_indices = @transform_4, window_bounds = array<i64: 32, 1>}, {pipeline_mode = #tpu.pipeline_mode<synchronous>, transform_indices = @transform_5, window_bounds = array<i64: 64, 96>}, {pipeline_mode = #tpu.pipeline_mode<synchronous>, transform_indices = @transform_6, window_bounds = array<i64: 64, 1>}, {pipeline_mode = #tpu.pipeline_mode<synchronous>, transform_indices = @transform_7, window_bounds = array<i64: 64, 1>}, {pipeline_mode = #tpu.pipeline_mode<synchronous>, transform_indices = @transform_8, window_bounds = array<i64: 64, 192>}, {pipeline_mode = #tpu.pipeline_mode<synchronous>, transform_indices = @transform_9, window_bounds = array<i64: 32, 32>}, {pipeline_mode = #tpu.pipeline_mode<synchronous>, transform_indices = @transform_10, window_bounds = array<i64: 64, 64>}, {pipeline_mode = #tpu.pipeline_mode<synchronous>, transform_indices = @transform_11, window_bounds = array<i64: 128, 32>}, {transform_indices = @transform_12, window_bounds = array<i64: 1, 64, 32>}]} {
    %c0 = arith.constant 0 : index
    %c0_0 = arith.constant 0 : index
    %c0_1 = arith.constant 0 : index
    %0 = vector.load %arg1[%c0, %c0_0, %c0_1] : memref<1x32x128xf32, #tpu.memory_space<vmem>>, vector<1x32x128xf32>
    %1 = vector.shape_cast %0 : vector<1x32x128xf32> to vector<32x128xf32>
    %c0_2 = arith.constant 0 : index
    %c0_3 = arith.constant 0 : index
    %2 = vector.load %arg2[%c0_2, %c0_3] : memref<64x32xf32, #tpu.memory_space<vmem>>, vector<64x32xf32>
    %cst = arith.constant dense<0.000000e+00> : vector<64x128xf32>
    %3 = tpu.matmul %2, %1, %cst {dimension_numbers = #tpu.dot_dimension_numbers<[1], [0], [0], [1], [0, 0, 1, 1], [], []>} : vector<64x32xf32>, vector<32x128xf32>, vector<64x128xf32> -> vector<64x128xf32>
    %c0_4 = arith.constant 0 : index
    %c0_5 = arith.constant 0 : index
    %4 = vector.load %arg3[%c0_4, %c0_5] : memref<64x1xf32, #tpu.memory_space<vmem>>, vector<64x1xf32>
    %5 = vector.broadcast %4 : vector<64x1xf32> to vector<64x128xf32>
    %6 = arith.addf %3, %5 : vector<64x128xf32>
    %c0_6 = arith.constant 0 : index
    %c0_7 = arith.constant 0 : index
    %7 = vector.load %arg10[%c0_6, %c0_7] : memref<32x32xf32, #tpu.memory_space<vmem>>, vector<32x32xf32>
    %c0_8 = arith.constant 0 : index
    %c0_9 = arith.constant 0 : index
    %8 = vector.load %arg4[%c0_8, %c0_9] : memref<32x1xf32, #tpu.memory_space<vmem>>, vector<32x1xf32>
    %c0_10 = arith.constant 0 : index
    %c0_11 = arith.constant 0 : index
    %9 = vector.load %arg5[%c0_10, %c0_11] : memref<32x1xf32, #tpu.memory_space<vmem>>, vector<32x1xf32>
    %cst_12 = arith.constant dense<0.000000e+00> : vector<32xf32>
    %10 = vector.multi_reduction <add>, %1, %cst_12 [1] : vector<32x128xf32> to vector<32xf32>
    %11 = vector.shape_cast %10 : vector<32xf32> to vector<32x1xf32>
    %12 = arith.mulf %1, %1 : vector<32x128xf32>
    %cst_13 = arith.constant dense<0.000000e+00> : vector<32xf32>
    %13 = vector.multi_reduction <add>, %12, %cst_13 [1] : vector<32x128xf32> to vector<32xf32>
    %14 = vector.shape_cast %13 : vector<32xf32> to vector<32x1xf32>
    %cst_14 = arith.constant dense<0.000000e+00> : vector<32x1xf32>
    %15 = tpu.matmul %7, %11, %cst_14 {dimension_numbers = #tpu.dot_dimension_numbers<[1], [0], [0], [1], [0, 0, 1, 1], [], []>} : vector<32x32xf32>, vector<32x1xf32>, vector<32x1xf32> -> vector<32x1xf32>
    %cst_15 = arith.constant 7.812500e-03 : f32
    %16 = vector.broadcast %cst_15 : f32 to vector<32x1xf32>
    %17 = arith.mulf %15, %16 : vector<32x1xf32>
    %cst_16 = arith.constant dense<0.000000e+00> : vector<32x1xf32>
    %18 = tpu.matmul %7, %14, %cst_16 {dimension_numbers = #tpu.dot_dimension_numbers<[1], [0], [0], [1], [0, 0, 1, 1], [], []>} : vector<32x32xf32>, vector<32x1xf32>, vector<32x1xf32> -> vector<32x1xf32>
    %cst_17 = arith.constant 7.812500e-03 : f32
    %19 = vector.broadcast %cst_17 : f32 to vector<32x1xf32>
    %20 = arith.mulf %18, %19 : vector<32x1xf32>
    %21 = arith.mulf %17, %17 : vector<32x1xf32>
    %22 = arith.subf %20, %21 : vector<32x1xf32>
    %cst_18 = arith.constant 9.99999974E-6 : f32
    %23 = vector.broadcast %cst_18 : f32 to vector<32x1xf32>
    %24 = arith.addf %22, %23 : vector<32x1xf32>
    %25 = math.rsqrt %24 : vector<32x1xf32>
    %26 = vector.broadcast %17 : vector<32x1xf32> to vector<32x128xf32>
    %27 = arith.subf %1, %26 : vector<32x128xf32>
    %28 = vector.broadcast %25 : vector<32x1xf32> to vector<32x128xf32>
    %29 = arith.mulf %27, %28 : vector<32x128xf32>
    %30 = vector.broadcast %8 : vector<32x1xf32> to vector<32x128xf32>
    %31 = arith.mulf %29, %30 : vector<32x128xf32>
    %32 = vector.broadcast %9 : vector<32x1xf32> to vector<32x128xf32>
    %33 = arith.addf %31, %32 : vector<32x128xf32>
    %34 = arith.negf %33 : vector<32x128xf32>
    %35 = math.exp %34 : vector<32x128xf32>
    %cst_19 = arith.constant 1.000000e+00 : f32
    %36 = vector.broadcast %cst_19 : f32 to vector<32x128xf32>
    %37 = arith.addf %36, %35 : vector<32x128xf32>
    %38 = arith.divf %36, %37 : vector<32x128xf32>
    %39 = arith.mulf %33, %38 : vector<32x128xf32>
    %c0_20 = arith.constant 0 : index
    %c0_21 = arith.constant 0 : index
    %40 = vector.load %arg6[%c0_20, %c0_21] : memref<64x96xf32, #tpu.memory_space<vmem>>, vector<64x96xf32>
    %41 = tpu.iota {dimensions = array<i32: 1>} : vector<32x128xi32>
    %cst_22 = arith.constant 0.000000e+00 : f32
    %42 = vector.broadcast %cst_22 : f32 to vector<32x128xf32>
    %c0_i32 = arith.constant 0 : i32
    %43 = vector.broadcast %c0_i32 : i32 to vector<32x128xi32>
    %44 = arith.cmpi eq, %41, %43 : vector<32x128xi32>
    %c1_i32 = arith.constant 1 : i32
    %45 = tpu.dynamic_rotate %39 by %c1_i32 dim 1 : vector<32x128xf32>, i32 -> vector<32x128xf32>
    %46 = arith.select %44, %42, %45 : vector<32x128xi1>, vector<32x128xf32>
    %c127_i32 = arith.constant 127 : i32
    %47 = vector.broadcast %c127_i32 : i32 to vector<32x128xi32>
    %48 = arith.cmpi eq, %41, %47 : vector<32x128xi32>
    %c127_i32_23 = arith.constant 127 : i32
    %49 = tpu.dynamic_rotate %39 by %c127_i32_23 dim 1 : vector<32x128xf32>, i32 -> vector<32x128xf32>
    %50 = arith.select %48, %42, %49 : vector<32x128xi1>, vector<32x128xf32>
    %51 = tpu.concatenate %46, %39, %50 in 0 : vector<32x128xf32>, vector<32x128xf32>, vector<32x128xf32> -> vector<96x128xf32>
    %cst_24 = arith.constant dense<0.000000e+00> : vector<64x128xf32>
    %52 = tpu.matmul %40, %51, %cst_24 {dimension_numbers = #tpu.dot_dimension_numbers<[1], [0], [0], [1], [0, 0, 1, 1], [], []>} : vector<64x96xf32>, vector<96x128xf32>, vector<64x128xf32> -> vector<64x128xf32>
    %c0_25 = arith.constant 0 : index
    %c0_26 = arith.constant 0 : index
    %53 = vector.load %arg11[%c0_25, %c0_26] : memref<64x64xf32, #tpu.memory_space<vmem>>, vector<64x64xf32>
    %c0_27 = arith.constant 0 : index
    %c0_28 = arith.constant 0 : index
    %54 = vector.load %arg7[%c0_27, %c0_28] : memref<64x1xf32, #tpu.memory_space<vmem>>, vector<64x1xf32>
    %c0_29 = arith.constant 0 : index
    %c0_30 = arith.constant 0 : index
    %55 = vector.load %arg8[%c0_29, %c0_30] : memref<64x1xf32, #tpu.memory_space<vmem>>, vector<64x1xf32>
    %cst_31 = arith.constant dense<0.000000e+00> : vector<64xf32>
    %56 = vector.multi_reduction <add>, %52, %cst_31 [1] : vector<64x128xf32> to vector<64xf32>
    %57 = vector.shape_cast %56 : vector<64xf32> to vector<64x1xf32>
    %58 = arith.mulf %52, %52 : vector<64x128xf32>
    %cst_32 = arith.constant dense<0.000000e+00> : vector<64xf32>
    %59 = vector.multi_reduction <add>, %58, %cst_32 [1] : vector<64x128xf32> to vector<64xf32>
    %60 = vector.shape_cast %59 : vector<64xf32> to vector<64x1xf32>
    %cst_33 = arith.constant dense<0.000000e+00> : vector<64x1xf32>
    %61 = tpu.matmul %53, %57, %cst_33 {dimension_numbers = #tpu.dot_dimension_numbers<[1], [0], [0], [1], [0, 0, 1, 1], [], []>} : vector<64x64xf32>, vector<64x1xf32>, vector<64x1xf32> -> vector<64x1xf32>
    %cst_34 = arith.constant 3.906250e-03 : f32
    %62 = vector.broadcast %cst_34 : f32 to vector<64x1xf32>
    %63 = arith.mulf %61, %62 : vector<64x1xf32>
    %cst_35 = arith.constant dense<0.000000e+00> : vector<64x1xf32>
    %64 = tpu.matmul %53, %60, %cst_35 {dimension_numbers = #tpu.dot_dimension_numbers<[1], [0], [0], [1], [0, 0, 1, 1], [], []>} : vector<64x64xf32>, vector<64x1xf32>, vector<64x1xf32> -> vector<64x1xf32>
    %cst_36 = arith.constant 3.906250e-03 : f32
    %65 = vector.broadcast %cst_36 : f32 to vector<64x1xf32>
    %66 = arith.mulf %64, %65 : vector<64x1xf32>
    %67 = arith.mulf %63, %63 : vector<64x1xf32>
    %68 = arith.subf %66, %67 : vector<64x1xf32>
    %cst_37 = arith.constant 9.99999974E-6 : f32
    %69 = vector.broadcast %cst_37 : f32 to vector<64x1xf32>
    %70 = arith.addf %68, %69 : vector<64x1xf32>
    %71 = math.rsqrt %70 : vector<64x1xf32>
    %72 = vector.broadcast %63 : vector<64x1xf32> to vector<64x128xf32>
    %73 = arith.subf %52, %72 : vector<64x128xf32>
    %74 = vector.broadcast %71 : vector<64x1xf32> to vector<64x128xf32>
    %75 = arith.mulf %73, %74 : vector<64x128xf32>
    %76 = vector.broadcast %54 : vector<64x1xf32> to vector<64x128xf32>
    %77 = arith.mulf %75, %76 : vector<64x128xf32>
    %78 = vector.broadcast %55 : vector<64x1xf32> to vector<64x128xf32>
    %79 = arith.addf %77, %78 : vector<64x128xf32>
    %80 = arith.negf %79 : vector<64x128xf32>
    %81 = math.exp %80 : vector<64x128xf32>
    %cst_38 = arith.constant 1.000000e+00 : f32
    %82 = vector.broadcast %cst_38 : f32 to vector<64x128xf32>
    %83 = arith.addf %82, %81 : vector<64x128xf32>
    %84 = arith.divf %82, %83 : vector<64x128xf32>
    %85 = arith.mulf %79, %84 : vector<64x128xf32>
    %c0_39 = arith.constant 0 : index
    %c0_40 = arith.constant 0 : index
    %86 = vector.load %arg9[%c0_39, %c0_40] : memref<64x192xf32, #tpu.memory_space<vmem>>, vector<64x192xf32>
    %87 = tpu.iota {dimensions = array<i32: 1>} : vector<64x128xi32>
    %cst_41 = arith.constant 0.000000e+00 : f32
    %88 = vector.broadcast %cst_41 : f32 to vector<64x128xf32>
    %c0_i32_42 = arith.constant 0 : i32
    %89 = vector.broadcast %c0_i32_42 : i32 to vector<64x128xi32>
    %90 = arith.cmpi eq, %87, %89 : vector<64x128xi32>
    %c1_i32_43 = arith.constant 1 : i32
    %91 = tpu.dynamic_rotate %85 by %c1_i32_43 dim 1 : vector<64x128xf32>, i32 -> vector<64x128xf32>
    %92 = arith.select %90, %88, %91 : vector<64x128xi1>, vector<64x128xf32>
    %c127_i32_44 = arith.constant 127 : i32
    %93 = vector.broadcast %c127_i32_44 : i32 to vector<64x128xi32>
    %94 = arith.cmpi eq, %87, %93 : vector<64x128xi32>
    %c127_i32_45 = arith.constant 127 : i32
    %95 = tpu.dynamic_rotate %85 by %c127_i32_45 dim 1 : vector<64x128xf32>, i32 -> vector<64x128xf32>
    %96 = arith.select %94, %88, %95 : vector<64x128xi1>, vector<64x128xf32>
    %97 = tpu.concatenate %92, %85, %96 in 0 : vector<64x128xf32>, vector<64x128xf32>, vector<64x128xf32> -> vector<192x128xf32>
    %cst_46 = arith.constant dense<0.000000e+00> : vector<64x128xf32>
    %98 = tpu.matmul %86, %97, %cst_46 {dimension_numbers = #tpu.dot_dimension_numbers<[1], [0], [0], [1], [0, 0, 1, 1], [], []>} : vector<64x192xf32>, vector<192x128xf32>, vector<64x128xf32> -> vector<64x128xf32>
    %99 = arith.addf %98, %6 : vector<64x128xf32>
    %c0_47 = arith.constant 0 : index
    %c0_48 = arith.constant 0 : index
    %100 = vector.load %arg12[%c0_47, %c0_48] : memref<128x32xf32, #tpu.memory_space<vmem>>, vector<128x32xf32>
    %cst_49 = arith.constant dense<0.000000e+00> : vector<64x32xf32>
    %101 = tpu.matmul %99, %100, %cst_49 {dimension_numbers = #tpu.dot_dimension_numbers<[1], [0], [0], [1], [0, 0, 1, 1], [], []>} : vector<64x128xf32>, vector<128x32xf32>, vector<64x32xf32> -> vector<64x32xf32>
    %c0_50 = arith.constant 0 : index
    %c0_51 = arith.constant 0 : index
    %c0_52 = arith.constant 0 : index
    %102 = vector.load %arg13[%c0_50, %c0_51, %c0_52] : memref<1x64x32xf32, #tpu.memory_space<vmem>>, vector<1x64x32xf32>
    %103 = vector.shape_cast %102 : vector<1x64x32xf32> to vector<64x32xf32>
    %104 = vector.shape_cast %101 : vector<64x32xf32> to vector<1x64x32xf32>
    tpu.vector_store %arg13[%c0_50, %c0_51, %c0_52], %104 {strides = array<i32>} : memref<1x64x32xf32, #tpu.memory_space<vmem>>, vector<1x64x32xf32>,
    return
  }
  func.func @transform_0(%arg0: i32) -> (i32, i32, i32) {
    %c0_i32 = arith.constant 0 : i32
    %c0_i32_0 = arith.constant 0 : i32
    %c0_i32_1 = arith.constant 0 : i32
    return %arg0, %c0_i32, %c0_i32_0 : i32, i32, i32
  }
  func.func @transform_1(%arg0: i32) -> (i32, i32) {
    %c0_i32 = arith.constant 0 : i32
    %c0_i32_0 = arith.constant 0 : i32
    %c0_i32_1 = arith.constant 0 : i32
    return %c0_i32, %c0_i32_0 : i32, i32
  }
  func.func @transform_2(%arg0: i32) -> (i32, i32) {
    %c0_i32 = arith.constant 0 : i32
    %c0_i32_0 = arith.constant 0 : i32
    %c0_i32_1 = arith.constant 0 : i32
    return %c0_i32, %c0_i32_0 : i32, i32
  }
  func.func @transform_3(%arg0: i32) -> (i32, i32) {
    %c0_i32 = arith.constant 0 : i32
    %c0_i32_0 = arith.constant 0 : i32
    %c0_i32_1 = arith.constant 0 : i32
    return %c0_i32, %c0_i32_0 : i32, i32
  }
  func.func @transform_4(%arg0: i32) -> (i32, i32) {
    %c0_i32 = arith.constant 0 : i32
    %c0_i32_0 = arith.constant 0 : i32
    %c0_i32_1 = arith.constant 0 : i32
    return %c0_i32, %c0_i32_0 : i32, i32
  }
  func.func @transform_5(%arg0: i32) -> (i32, i32) {
    %c0_i32 = arith.constant 0 : i32
    %c0_i32_0 = arith.constant 0 : i32
    %c0_i32_1 = arith.constant 0 : i32
    return %c0_i32, %c0_i32_0 : i32, i32
  }
  func.func @transform_6(%arg0: i32) -> (i32, i32) {
    %c0_i32 = arith.constant 0 : i32
    %c0_i32_0 = arith.constant 0 : i32
    %c0_i32_1 = arith.constant 0 : i32
    return %c0_i32, %c0_i32_0 : i32, i32
  }
  func.func @transform_7(%arg0: i32) -> (i32, i32) {
    %c0_i32 = arith.constant 0 : i32
    %c0_i32_0 = arith.constant 0 : i32
    %c0_i32_1 = arith.constant 0 : i32
    return %c0_i32, %c0_i32_0 : i32, i32
  }
  func.func @transform_8(%arg0: i32) -> (i32, i32) {
    %c0_i32 = arith.constant 0 : i32
    %c0_i32_0 = arith.constant 0 : i32
    %c0_i32_1 = arith.constant 0 : i32
    return %c0_i32, %c0_i32_0 : i32, i32
  }
  func.func @transform_9(%arg0: i32) -> (i32, i32) {
    %c0_i32 = arith.constant 0 : i32
    %c0_i32_0 = arith.constant 0 : i32
    %c0_i32_1 = arith.constant 0 : i32
    return %c0_i32, %c0_i32_0 : i32, i32
  }
  func.func @transform_10(%arg0: i32) -> (i32, i32) {
    %c0_i32 = arith.constant 0 : i32
    %c0_i32_0 = arith.constant 0 : i32
    %c0_i32_1 = arith.constant 0 : i32
    return %c0_i32, %c0_i32_0 : i32, i32
  }
  func.func @transform_11(%arg0: i32) -> (i32, i32) {
    %c0_i32 = arith.constant 0 : i32
    %c0_i32_0 = arith.constant 0 : i32
    %c0_i32_1 = arith.constant 0 : i32
    return %c0_i32, %c0_i32_0 : i32, i32
  }
  func.func @transform_12(%arg0: i32) -> (i32, i32, i32) {
    %c0_i32 = arith.constant 0 : i32
    %c0_i32_0 = arith.constant 0 : i32
    %c0_i32_1 = arith.constant 0 : i32
    return %arg0, %c0_i32, %c0_i32_0 : i32, i32, i32
  }
}

</mosaic_0001>

<llo_original>
// kernel: tpu_custom_call.1
$region0: #{tpu_custom_call.1}
  #allocation0 [shape = 'u32[]', space=smem, size = 0x4, offset = 0x4, fixed_abs, tag = 'smem constant byte address 0x4 - core index']
  #allocation1 [shape = 'u32[144,128]{1,0:T(1,128)}', space=vmem, size = 0x12000, scoped, tag = 'internal scratch']
  %s0 = inlined_call_operand.vmem [shape: f32[2,32,128], index: 0, kind: input, shape index: {}]
  %s1 = inlined_call_operand.vmem [shape: f32[64,32], index: 1, kind: input, shape index: {}]
  %s2 = inlined_call_operand.vmem [shape: f32[64,1], index: 2, kind: input, shape index: {}]
  %s3 = inlined_call_operand.vmem [shape: f32[32,1], index: 3, kind: input, shape index: {}]
  %s4 = inlined_call_operand.vmem [shape: f32[32,1], index: 4, kind: input, shape index: {}]
  %s5 = inlined_call_operand.vmem [shape: f32[64,96], index: 5, kind: input, shape index: {}]
  %s6 = inlined_call_operand.vmem [shape: f32[64,1], index: 6, kind: input, shape index: {}]
  %s7 = inlined_call_operand.vmem [shape: f32[64,1], index: 7, kind: input, shape index: {}]
  %s8 = inlined_call_operand.vmem [shape: f32[64,192], index: 8, kind: input, shape index: {}]
  %s9 = inlined_call_operand.vmem [shape: f32[32,32], index: 9, kind: input, shape index: {}]
  %s10 = inlined_call_operand.vmem [shape: f32[64,64], index: 10, kind: input, shape index: {}]
  %s11 = inlined_call_operand.vmem [shape: f32[128,32], index: 11, kind: input, shape index: {}]
  %s12 = inlined_call_operand.vmem [shape: f32[2,64,32], index: 12, kind: output, shape index: {}]
  %s13 = sld [smem:[#allocation0]]
  $region81: #{tpu_custom_call.1} parent=0
    _
  %s15 = ssub.s32 1, %s13
  %s16 = scalar_select 0, %s15, %s13
  loop: start=0, step=1, limit=4
  $region2: #{tpu_custom_call.1} parent=0 // loop_pre_header
    _
  $region3: #{tpu_custom_call.1} parent=0 // loop_header
    %s18 = sphi 0, %s22
    %p19 = scmp.ge.s32.totalorder %s18, 4
    %s28 = sphi 0, %s30
    %s31 = sphi 0, %s28
    %s32 = sphi 0, %s31
    %s48 = sphi 0, %s32
    %s52 = sphi 0, %s52
    %s54 = sphi 0, %s52
    %s55 = sphi 0, %s54
    %s69 = sphi 0, %s55
    %s73 = sphi 0, %s73
    %s75 = sphi 0, %s73
    %s76 = sphi 0, %s75
    %s90 = sphi 0, %s76
    %s94 = sphi 0, %s94
    %s96 = sphi 0, %s94
    %s97 = sphi 0, %s96
    %s111 = sphi 0, %s97
    %s115 = sphi 0, %s115
    %s117 = sphi 0, %s115
    %s118 = sphi 0, %s117
    %s132 = sphi 0, %s118
    %s136 = sphi 0, %s136
    %s138 = sphi 0, %s136
    %s139 = sphi 0, %s138
    %s153 = sphi 0, %s139
    %s157 = sphi 0, %s157
    %s159 = sphi 0, %s157
    %s160 = sphi 0, %s159
    %s174 = sphi 0, %s160
    %s178 = sphi 0, %s178
    %s180 = sphi 0, %s178
    %s181 = sphi 0, %s180
    %s195 = sphi 0, %s181
    %s199 = sphi 0, %s199
    %s201 = sphi 0, %s199
    %s202 = sphi 0, %s201
    %s216 = sphi 0, %s202
    %s220 = sphi 0, %s220
    %s222 = sphi 0, %s220
    %s223 = sphi 0, %s222
    %s237 = sphi 0, %s223
    %s241 = sphi 0, %s241
    %s243 = sphi 0, %s241
    %s244 = sphi 0, %s243
    %s258 = sphi 0, %s244
    %s262 = sphi 0, %s262
    %s264 = sphi 0, %s262
    %s265 = sphi 0, %s264
    %s279 = sphi 0, %s265
    %s285 = sphi 0, %s287
    %s288 = sphi 0, %s285
    %s289 = sphi 0, %s288
    %s305 = sphi 0, %s289
  $region4: #{tpu_custom_call.1} parent=0 // loop_header_branch
    %21 = sbr.rel (%p19) target = $region8
  $region5: #{tpu_custom_call.1} parent=0 // loop_body
    %s23 = ssub.s32 %s18, 1
    %s24 = ssub.s32 %s18, 2
    %s25 = sadd.s32 %s18, 1
    %s26 = ssub.s32 %s18, %s25
    %p27 = scmp.eq.s32.totalorder %s26, 0
    %s29 = sadd.s32 %s28, 1
    %s30 = scalar_select %p27, %s28, %s29
    %p33 = pneg %p27
    %p34 = scmp.eq.s32.totalorder %s18, 1
    %p35 = por %p33, %p34
    %p36 = scmp.ne.s32.totalorder %s28, %s31
    %p37 = scmp.eq.s32.totalorder %s18, 0
    %p38 = por %p36, %p37
    %p39 = scmp.ne.s32.totalorder %s28, %s31
    %p40 = scmp.eq.s32.totalorder %s23, 1
    %p41 = por %p39, %p40
    %p42 = scmp.ne.s32.totalorder %s31, %s32
    %p43 = scmp.eq.s32.totalorder %s23, 0
    %p44 = por %p42, %p43
    %p45 = scmp.ne.s32.totalorder %s31, %s32
    %p46 = scmp.eq.s32.totalorder %s24, 1
    %p47 = por %p45, %p46
    %p49 = scmp.ne.s32.totalorder %s32, %s48
    %p50 = scmp.eq.s32.totalorder %s24, 0
    %p51 = por %p49, %p50
    %s53 = sadd.s32 %s52, 1
    %p56 = scmp.eq.s32.totalorder %s18, 1
    %p57 = scmp.ne.s32.totalorder %s52, %s54
    %p58 = scmp.eq.s32.totalorder %s18, 0
    %p59 = por %p57, %p58
    %p60 = scmp.ne.s32.totalorder %s52, %s54
    %p61 = scmp.eq.s32.totalorder %s23, 1
    %p62 = por %p60, %p61
    %p63 = scmp.ne.s32.totalorder %s54, %s55
    %p64 = scmp.eq.s32.totalorder %s23, 0
    %p65 = por %p63, %p64
    %p66 = scmp.ne.s32.totalorder %s54, %s55
    %p67 = scmp.eq.s32.totalorder %s24, 1
    %p68 = por %p66, %p67
    %p70 = scmp.ne.s32.totalorder %s55, %s69
    %p71 = scmp.eq.s32.totalorder %s24, 0
    %p72 = por %p70, %p71
    %s74 = sadd.s32 %s73, 1
    %p77 = scmp.eq.s32.totalorder %s18, 1
    %p78 = scmp.ne.s32.totalorder %s73, %s75
    %p79 = scmp.eq.s32.totalorder %s18, 0
    %p80 = por %p78, %p79
    %p81 = scmp.ne.s32.totalorder %s73, %s75
    %p82 = scmp.eq.s32.totalorder %s23, 1
    %p83 = por %p81, %p82
    %p84 = scmp.ne.s32.totalorder %s75, %s76
    %p85 = scmp.eq.s32.totalorder %s23, 0
    %p86 = por %p84, %p85
    %p87 = scmp.ne.s32.totalorder %s75, %s76
    %p88 = scmp.eq.s32.totalorder %s24, 1
    %p89 = por %p87, %p88
    %p91 = scmp.ne.s32.totalorder %s76, %s90
    %p92 = scmp.eq.s32.totalorder %s24, 0
    %p93 = por %p91, %p92
    %s95 = sadd.s32 %s94, 1
    %p98 = scmp.eq.s32.totalorder %s18, 1
    %p99 = scmp.ne.s32.totalorder %s94, %s96
    %p100 = scmp.eq.s32.totalorder %s18, 0
    %p101 = por %p99, %p100
    %p102 = scmp.ne.s32.totalorder %s94, %s96
    %p103 = scmp.eq.s32.totalorder %s23, 1
    %p104 = por %p102, %p103
    %p105 = scmp.ne.s32.totalorder %s96, %s97
    %p106 = scmp.eq.s32.totalorder %s23, 0
    %p107 = por %p105, %p106
    %p108 = scmp.ne.s32.totalorder %s96, %s97
    %p109 = scmp.eq.s32.totalorder %s24, 1
    %p110 = por %p108, %p109
    %p112 = scmp.ne.s32.totalorder %s97, %s111
    %p113 = scmp.eq.s32.totalorder %s24, 0
    %p114 = por %p112, %p113
    %s116 = sadd.s32 %s115, 1
    %p119 = scmp.eq.s32.totalorder %s18, 1
    %p120 = scmp.ne.s32.totalorder %s115, %s117
    %p121 = scmp.eq.s32.totalorder %s18, 0
    %p122 = por %p120, %p121
    %p123 = scmp.ne.s32.totalorder %s115, %s117
    %p124 = scmp.eq.s32.totalorder %s23, 1
    %p125 = por %p123, %p124
    %p126 = scmp.ne.s32.totalorder %s117, %s118
    %p127 = scmp.eq.s32.totalorder %s23, 0
    %p128 = por %p126, %p127
    %p129 = scmp.ne.s32.totalorder %s117, %s118
    %p130 = scmp.eq.s32.totalorder %s24, 1
    %p131 = por %p129, %p130
    %p133 = scmp.ne.s32.totalorder %s118, %s132
    %p134 = scmp.eq.s32.totalorder %s24, 0
    %p135 = por %p133, %p134
    %s137 = sadd.s32 %s136, 1
    %p140 = scmp.eq.s32.totalorder %s18, 1
    %p141 = scmp.ne.s32.totalorder %s136, %s138
    %p142 = scmp.eq.s32.totalorder %s18, 0
    %p143 = por %p141, %p142
    %p144 = scmp.ne.s32.totalorder %s136, %s138
    %p145 = scmp.eq.s32.totalorder %s23, 1
    %p146 = por %p144, %p145
    %p147 = scmp.ne.s32.totalorder %s138, %s139
    %p148 = scmp.eq.s32.totalorder %s23, 0
    %p149 = por %p147, %p148
    %p150 = scmp.ne.s32.totalorder %s138, %s139
    %p151 = scmp.eq.s32.totalorder %s24, 1
    %p152 = por %p150, %p151
    %p154 = scmp.ne.s32.totalorder %s139, %s153
    %p155 = scmp.eq.s32.totalorder %s24, 0
    %p156 = por %p154, %p155
    %s158 = sadd.s32 %s157, 1
    %p161 = scmp.eq.s32.totalorder %s18, 1
    %p162 = scmp.ne.s32.totalorder %s157, %s159
    %p163 = scmp.eq.s32.totalorder %s18, 0
    %p164 = por %p162, %p163
    %p165 = scmp.ne.s32.totalorder %s157, %s159
    %p166 = scmp.eq.s32.totalorder %s23, 1
    %p167 = por %p165, %p166
    %p168 = scmp.ne.s32.totalorder %s159, %s160
    %p169 = scmp.eq.s32.totalorder %s23, 0
    %p170 = por %p168, %p169
    %p171 = scmp.ne.s32.totalorder %s159, %s160
    %p172 = scmp.eq.s32.totalorder %s24, 1
    %p173 = por %p171, %p172
    %p175 = scmp.ne.s32.totalorder %s160, %s174
    %p176 = scmp.eq.s32.totalorder %s24, 0
    %p177 = por %p175, %p176
    %s179 = sadd.s32 %s178, 1
    %p182 = scmp.eq.s32.totalorder %s18, 1
    %p183 = scmp.ne.s32.totalorder %s178, %s180
    %p184 = scmp.eq.s32.totalorder %s18, 0
    %p185 = por %p183, %p184
    %p186 = scmp.ne.s32.totalorder %s178, %s180
    %p187 = scmp.eq.s32.totalorder %s23, 1
    %p188 = por %p186, %p187
    %p189 = scmp.ne.s32.totalorder %s180, %s181
    %p190 = scmp.eq.s32.totalorder %s23, 0
    %p191 = por %p189, %p190
    %p192 = scmp.ne.s32.totalorder %s180, %s181
    %p193 = scmp.eq.s32.totalorder %s24, 1
    %p194 = por %p192, %p193
    %p196 = scmp.ne.s32.totalorder %s181, %s195
    %p197 = scmp.eq.s32.totalorder %s24, 0
    %p198 = por %p196, %p197
    %s200 = sadd.s32 %s199, 1
    %p203 = scmp.eq.s32.totalorder %s18, 1
    %p204 = scmp.ne.s32.totalorder %s199, %s201
    %p205 = scmp.eq.s32.totalorder %s18, 0
    %p206 = por %p204, %p205
    %p207 = scmp.ne.s32.totalorder %s199, %s201
    %p208 = scmp.eq.s32.totalorder %s23, 1
    %p209 = por %p207, %p208
    %p210 = scmp.ne.s32.totalorder %s201, %s202
    %p211 = scmp.eq.s32.totalorder %s23, 0
    %p212 = por %p210, %p211
    %p213 = scmp.ne.s32.totalorder %s201, %s202
    %p214 = scmp.eq.s32.totalorder %s24, 1
    %p215 = por %p213, %p214
    %p217 = scmp.ne.s32.totalorder %s202, %s216
    %p218 = scmp.eq.s32.totalorder %s24, 0
    %p219 = por %p217, %p218
    %s221 = sadd.s32 %s220, 1
    %p224 = scmp.eq.s32.totalorder %s18, 1
    %p225 = scmp.ne.s32.totalorder %s220, %s222
    %p226 = scmp.eq.s32.totalorder %s18, 0
    %p227 = por %p225, %p226
    %p228 = scmp.ne.s32.totalorder %s220, %s222
    %p229 = scmp.eq.s32.totalorder %s23, 1
    %p230 = por %p228, %p229
    %p231 = scmp.ne.s32.totalorder %s222, %s223
    %p232 = scmp.eq.s32.totalorder %s23, 0
    %p233 = por %p231, %p232
    %p234 = scmp.ne.s32.totalorder %s222, %s223
    %p235 = scmp.eq.s32.totalorder %s24, 1
    %p236 = por %p234, %p235
    %p238 = scmp.ne.s32.totalorder %s223, %s237
    %p239 = scmp.eq.s32.totalorder %s24, 0
    %p240 = por %p238, %p239
    %s242 = sadd.s32 %s241, 1
    %p245 = scmp.eq.s32.totalorder %s18, 1
    %p246 = scmp.ne.s32.totalorder %s241, %s243
    %p247 = scmp.eq.s32.totalorder %s18, 0
    %p248 = por %p246, %p247
    %p249 = scmp.ne.s32.totalorder %s241, %s243
    %p250 = scmp.eq.s32.totalorder %s23, 1
    %p251 = por %p249, %p250
    %p252 = scmp.ne.s32.totalorder %s243, %s244
    %p253 = scmp.eq.s32.totalorder %s23, 0
    %p254 = por %p252, %p253
    %p255 = scmp.ne.s32.totalorder %s243, %s244
    %p256 = scmp.eq.s32.totalorder %s24, 1
    %p257 = por %p255, %p256
    %p259 = scmp.ne.s32.totalorder %s244, %s258
    %p260 = scmp.eq.s32.totalorder %s24, 0
    %p261 = por %p259, %p260
    %s263 = sadd.s32 %s262, 1
    %p266 = scmp.eq.s32.totalorder %s18, 1
    %p267 = scmp.ne.s32.totalorder %s262, %s264
    %p268 = scmp.eq.s32.totalorder %s18, 0
    %p269 = por %p267, %p268
    %p270 = scmp.ne.s32.totalorder %s262, %s264
    %p271 = scmp.eq.s32.totalorder %s23, 1
    %p272 = por %p270, %p271
    %p273 = scmp.ne.s32.totalorder %s264, %s265
    %p274 = scmp.eq.s32.totalorder %s23, 0
    %p275 = por %p273, %p274
    %p276 = scmp.ne.s32.totalorder %s264, %s265
    %p277 = scmp.eq.s32.totalorder %s24, 1
    %p278 = por %p276, %p277
    %p280 = scmp.ne.s32.totalorder %s265, %s279
    %p281 = scmp.eq.s32.totalorder %s24, 0
    %p282 = por %p280, %p281
    %s283 = ssub.s32 %s18, %s25
    %p284 = scmp.eq.s32.totalorder %s283, 0
    %s286 = sadd.s32 %s285, 1
    %s287 = scalar_select %p284, %s285, %s286
    %p290 = pneg %p284
    %p291 = scmp.eq.s32.totalorder %s18, 1
    %p292 = por %p290, %p291
    %p293 = scmp.ne.s32.totalorder %s285, %s288
    %p294 = scmp.eq.s32.totalorder %s18, 0
    %p295 = por %p293, %p294
    %p296 = scmp.ne.s32.totalorder %s285, %s288
    %p297 = scmp.eq.s32.totalorder %s23, 1
    %p298 = por %p296, %p297
    %p299 = scmp.ne.s32.totalorder %s288, %s289
    %p300 = scmp.eq.s32.totalorder %s23, 0
    %p301 = por %p299, %p300
    %p302 = scmp.ne.s32.totalorder %s288, %s289
    %p303 = scmp.eq.s32.totalorder %s24, 1
    %p304 = por %p302, %p303
    %p306 = scmp.ne.s32.totalorder %s289, %s305
    %p307 = scmp.eq.s32.totalorder %s24, 0
    %p308 = por %p306, %p307
    %p309 = scmp.le.s32.totalorder 1, %s18
    %p310 = scmp.lt.s32.totalorder %s18, 3
    %p311 = pnand %p309, %p310
    %p312 = pneg %p311
    // Predicated region
    $region9: #{tpu_custom_call.1} parent=5 // pred_check
      _
    $region10: #{tpu_custom_call.1} parent=5 // pred_check_branch
      %314 = sbr.rel (%p311) target = $region12
    $region11: #{tpu_custom_call.1} parent=5 // pred_region
      %s315 = ssub.s32 %s18, 1
      // Predicated region
      $region13: #{tpu_custom_call.1} parent=11 // pred_check
        %p316 = pneg %p65
      $region14: #{tpu_custom_call.1} parent=11 // pred_check_branch
        %318 = sbr.rel (%p316) target = $region16
      $region15: #{tpu_custom_call.1} parent=11 // pred_region
        _
      $region16: #{tpu_custom_call.1} parent=11 // pred_fallthru
        _
      // Predicated region
      $region17: #{tpu_custom_call.1} parent=11 // pred_check
        %p319 = pneg %p86
      $region18: #{tpu_custom_call.1} parent=11 // pred_check_branch
        %321 = sbr.rel (%p319) target = $region20
      $region19: #{tpu_custom_call.1} parent=11 // pred_region
        _
      $region20: #{tpu_custom_call.1} parent=11 // pred_fallthru
        _
      // Predicated region
      $region21: #{tpu_custom_call.1} parent=11 // pred_check
        %p322 = pneg %p107
      $region22: #{tpu_custom_call.1} parent=11 // pred_check_branch
        %324 = sbr.rel (%p322) target = $region24
      $region23: #{tpu_custom_call.1} parent=11 // pred_region
        _
      $region24: #{tpu_custom_call.1} parent=11 // pred_fallthru
        _
      // Predicated region
      $region25: #{tpu_custom_call.1} parent=11 // pred_check
        %p325 = pneg %p128
      $region26: #{tpu_custom_call.1} parent=11 // pred_check_branch
        %327 = sbr.rel (%p325) target = $region28
      $region27: #{tpu_custom_call.1} parent=11 // pred_region
        _
      $region28: #{tpu_custom_call.1} parent=11 // pred_fallthru
        _
      // Predicated region
      $region29: #{tpu_custom_call.1} parent=11 // pred_check
        %p328 = pneg %p149
      $region30: #{tpu_custom_call.1} parent=11 // pred_check_branch
        %330 = sbr.rel (%p328) target = $region32
      $region31: #{tpu_custom_call.1} parent=11 // pred_region
        _
      $region32: #{tpu_custom_call.1} parent=11 // pred_fallthru
        _
      // Predicated region
      $region33: #{tpu_custom_call.1} parent=11 // pred_check
        %p331 = pneg %p170
      $region34: #{tpu_custom_call.1} parent=11 // pred_check_branch
        %333 = sbr.rel (%p331) target = $region36
      $region35: #{tpu_custom_call.1} parent=11 // pred_region
        _
      $region36: #{tpu_custom_call.1} parent=11 // pred_fallthru
        _
      // Predicated region
      $region37: #{tpu_custom_call.1} parent=11 // pred_check
        %p334 = pneg %p191
      $region38: #{tpu_custom_call.1} parent=11 // pred_check_branch
        %336 = sbr.rel (%p334) target = $region40
      $region39: #{tpu_custom_call.1} parent=11 // pred_region
        _
      $region40: #{tpu_custom_call.1} parent=11 // pred_fallthru
        _
      // Predicated region
      $region41: #{tpu_custom_call.1} parent=11 // pred_check
        %p337 = pneg %p212
      $region42: #{tpu_custom_call.1} parent=11 // pred_check_branch
        %339 = sbr.rel (%p337) target = $region44
      $region43: #{tpu_custom_call.1} parent=11 // pred_region
        _
      $region44: #{tpu_custom_call.1} parent=11 // pred_fallthru
        _
      // Predicated region
      $region45: #{tpu_custom_call.1} parent=11 // pred_check
        %p340 = pneg %p233
      $region46: #{tpu_custom_call.1} parent=11 // pred_check_branch
        %342 = sbr.rel (%p340) target = $region48
      $region47: #{tpu_custom_call.1} parent=11 // pred_region
        _
      $region48: #{tpu_custom_call.1} parent=11 // pred_fallthru
        _
      // Predicated region
      $region49: #{tpu_custom_call.1} parent=11 // pred_check
        %p343 = pneg %p254
      $region50: #{tpu_custom_call.1} parent=11 // pred_check_branch
        %345 = sbr.rel (%p343) target = $region52
      $region51: #{tpu_custom_call.1} parent=11 // pred_region
        _
      $region52: #{tpu_custom_call.1} parent=11 // pred_fallthru
        _
      // Predicated region
      $region53: #{tpu_custom_call.1} parent=11 // pred_check
        %p346 = pneg %p275
      $region54: #{tpu_custom_call.1} parent=11 // pred_check_branch
        %348 = sbr.rel (%p346) target = $region56
      $region55: #{tpu_custom_call.1} parent=11 // pred_region
        _
      $region56: #{tpu_custom_call.1} parent=11 // pred_fallthru
        _
    $region12: #{tpu_custom_call.1} parent=5 // pred_fallthru
      _
    %p349 = scmp.lt.s32.totalorder %s18, 2
    // Predicated region
    $region57: #{tpu_custom_call.1} parent=5 // pred_check
      %p350 = pneg %p349
    $region58: #{tpu_custom_call.1} parent=5 // pred_check_branch
      %352 = sbr.rel (%p350) target = $region60
    $region59: #{tpu_custom_call.1} parent=5 // pred_region
      // Predicated region
      $region61: #{tpu_custom_call.1} parent=59 // pred_check
        %p353 = pneg %p38
      $region62: #{tpu_custom_call.1} parent=59 // pred_check_branch
        %355 = sbr.rel (%p353) target = $region64
      $region63: #{tpu_custom_call.1} parent=59 // pred_region
        %p356 = scmp.lt.s32.totalorder %s18, 1
        %s357 = scalar_select %p356, %s18, 1
        %s358 = smul.addr %s357, 4
        %s359 = smul.addr %s358, 8
        %s360 = scalar_lea.vmem %s0, %s359
      $region64: #{tpu_custom_call.1} parent=59 // pred_fallthru
        _
    $region60: #{tpu_custom_call.1} parent=5 // pred_fallthru
      _
    %p361 = scmp.le.s32.totalorder 1, %s18
    %p362 = scmp.lt.s32.totalorder %s18, 3
    %p363 = pnand %p361, %p362
    %p364 = pneg %p363
    // Predicated region
    $region65: #{tpu_custom_call.1} parent=5 // pred_check
      _
    $region66: #{tpu_custom_call.1} parent=5 // pred_check_branch
      %366 = sbr.rel (%p363) target = $region68
    $region67: #{tpu_custom_call.1} parent=5 // pred_region
      %s367 = ssub.s32 %s18, 1
      %p368 = scmp.lt.s32.totalorder %s23, 1
      %s369 = scalar_select %p368, %s23, 1
      %s370 = smul.addr %s369, 4
      %s371 = smul.addr %s370, 8
      %s372 = scalar_lea.vmem %s0, %s371
      %p373 = pneg %p44
      %p374 = pneg %p41
      %p375 = pneg %p65
      %p376 = pneg %p62
      %p377 = pneg %p86
      %p378 = pneg %p83
      %p379 = pneg %p107
      %p380 = pneg %p104
      %p381 = pneg %p128
      %p382 = pneg %p125
      %p383 = pneg %p149
      %p384 = pneg %p146
      %p385 = pneg %p170
      %p386 = pneg %p167
      %p387 = pneg %p191
      %p388 = pneg %p188
      %p389 = pneg %p212
      %p390 = pneg %p209
      %p391 = pneg %p233
      %p392 = pneg %p230
      %p393 = pneg %p254
      %p394 = pneg %p251
      %p395 = pneg %p275
      %p396 = pneg %p272
      %p397 = pneg %p301
      %p398 = pneg %p298
      %p399 = scmp.lt.s32.totalorder %s23, 1
      %s400 = scalar_select %p399, %s23, 1
      %s401 = smul.addr %s400, 8
      %s402 = smul.addr %s401, 8
      %s403 = scalar_lea.vmem %s12, %s402
      %p404 = scmp.lt.s32.totalorder %s23, 1
      %s405 = scalar_select %p404, %s23, 1
      %s406 = smul.addr %s405, 4
      %s407 = smul.addr %s406, 8
      %s408 = scalar_lea.vmem %s0, %s407
      %p409 = scmp.lt.s32.totalorder %s23, 1
      %s410 = scalar_select %p409, %s23, 1
      %s411 = smul.addr %s410, 8
      %s412 = smul.addr %s411, 8
      %s413 = scalar_lea.vmem %s12, %s412
      %v414 = vld [vmem:[%s408] sm:$0xff]
      %v415 = vld [vmem:[%s408 + $0x8] sm:$0xff]
      %v416 = vld [vmem:[%s408 + $0x10] sm:$0xff]
      %v417 = vld [vmem:[%s408 + $0x18] sm:$0xff]
      %v418 = vld [vmem:[%s1] sm:$0xff]
      %v419 = vld [vmem:[%s1 + $0x8] sm:$0xff]
      %v420 = vld [vmem:[%s1 + $0x10] sm:$0xff]
      %v421 = vld [vmem:[%s1 + $0x18] sm:$0xff]
      %v422 = vld [vmem:[%s1 + $0x20] sm:$0xff]
      %v423 = vld [vmem:[%s1 + $0x28] sm:$0xff]
      %v424 = vld [vmem:[%s1 + $0x30] sm:$0xff]
      %v425 = vld [vmem:[%s1 + $0x38] sm:$0xff]
      %v426 = vld [vmem:[%s2] sm:$0xff]
      %v427 = vld [vmem:[%s2 + $0x8] sm:$0xff]
      %v428 = vld [vmem:[%s2 + $0x10] sm:$0xff]
      %v429 = vld [vmem:[%s2 + $0x18] sm:$0xff]
      %v430 = vld [vmem:[%s2 + $0x20] sm:$0xff]
      %v431 = vld [vmem:[%s2 + $0x28] sm:$0xff]
      %v432 = vld [vmem:[%s2 + $0x30] sm:$0xff]
      %v433 = vld [vmem:[%s2 + $0x38] sm:$0xff]
      %435 = vset.pattern.permute.xlu0 0
      %436 = vperm.xlu0 %435, %v426
      %v437 = vpop.permute.xlu0 %436
      %440 = vset.pattern.permute.xlu0 0
      %441 = vperm.xlu0 %440, %v427
      %v442 = vpop.permute.xlu0 %441
      %445 = vset.pattern.permute.xlu0 0
      %446 = vperm.xlu0 %445, %v428
      %v447 = vpop.permute.xlu0 %446
      %450 = vset.pattern.permute.xlu0 0
      %451 = vperm.xlu0 %450, %v429
      %v452 = vpop.permute.xlu0 %451
      %455 = vset.pattern.permute.xlu0 0
      %456 = vperm.xlu0 %455, %v430
      %v457 = vpop.permute.xlu0 %456
      %460 = vset.pattern.permute.xlu0 0
      %461 = vperm.xlu0 %460, %v431
      %v462 = vpop.permute.xlu0 %461
      %465 = vset.pattern.permute.xlu0 0
      %466 = vperm.xlu0 %465, %v432
      %v467 = vpop.permute.xlu0 %466
      %470 = vset.pattern.permute.xlu0 0
      %471 = vperm.xlu0 %470, %v433
      %v472 = vpop.permute.xlu0 %471
      %vm474 = vcmask 261120
      %v476 = vsel %vm474, %v418, 0
      %v479 = vsel %vm474, %v419, 0
      %v482 = vsel %vm474, %v420, 0
      %v485 = vsel %vm474, %v421, 0
      %v488 = vsel %vm474, %v422, 0
      %v491 = vsel %vm474, %v423, 0
      %v494 = vsel %vm474, %v424, 0
      %v497 = vsel %vm474, %v425, 0
      %499 = vmatprep.subr.mxu0 0.0
      %500 = vmatpush1.msra.mxu0 0.0
      %501 = vmatprep.subr.mxu0 0.0
      %502 = vmatpush1.msra.mxu0 0.0
      %503 = vmatprep.subr.mxu0 0.0
      %504 = vmatpush1.msra.mxu0 0.0
      %505 = vmatprep.subr.mxu0 0.0
      %506 = vmatpush1.msra.mxu0 0.0
      %507 = vmatprep.subr.mxu0 0.0
      %508 = vmatpush1.msra.mxu0 0.0
      %509 = vmatprep.subr.mxu0 0.0
      %510 = vmatpush1.msra.mxu0 0.0
      %511 = vmatprep.subr.mxu0 0.0
      %512 = vmatpush1.msra.mxu0 0.0
      %513 = vmatprep.subr.mxu0 0.0
      %514 = vmatpush1.msra.mxu0 0.0
      %515 = vmatprep.subr.mxu0 0.0
      %516 = vmatpush1.msra.mxu0 0.0
      %517 = vmatprep.subr.mxu0 0.0
      %518 = vmatpush1.msra.mxu0 0.0
      %519 = vmatprep.subr.mxu0 0.0
      %520 = vmatpush1.msra.mxu0 0.0
      %521 = vmatprep.subr.mxu0 0.0
      %522 = vmatpush1.msra.mxu0 0.0
      %523 = vmatprep.subr.mxu0 0.0
      %524 = vmatpush1.msra.mxu0 %v417
      %525 = vmatprep.subr.mxu0 0.0
      %526 = vmatpush1.msra.mxu0 %v416
      %527 = vmatprep.subr.mxu0 0.0
      %528 = vmatpush1.msra.mxu0 %v415
      %529 = vmatprep.subr.mxu0 0.0
      %530 = vmatpush1.msra.mxu0 %v414
      %531 = vmatprep.subr.mxu0 0.0
      %532 = vmatpush2.msra.mxu0 0.0
      %533 = vmatprep.subr.mxu0 0.0
      %534 = vmatpush2.msra.mxu0 0.0
      %535 = vmatprep.subr.mxu0 0.0
      %536 = vmatpush2.msra.mxu0 0.0
      %537 = vmatprep.subr.mxu0 0.0
      %538 = vmatpush2.msra.mxu0 0.0
      %539 = vmatprep.subr.mxu0 0.0
      %540 = vmatpush2.msra.mxu0 0.0
      %541 = vmatprep.subr.mxu0 0.0
      %542 = vmatpush2.msra.mxu0 0.0
      %543 = vmatprep.subr.mxu0 0.0
      %544 = vmatpush2.msra.mxu0 0.0
      %545 = vmatprep.subr.mxu0 0.0
      %546 = vmatpush2.msra.mxu0 0.0
      %547 = vmatprep.subr.mxu0 0.0
      %548 = vmatpush2.msra.mxu0 0.0
      %549 = vmatprep.subr.mxu0 0.0
      %550 = vmatpush2.msra.mxu0 0.0
      %551 = vmatprep.subr.mxu0 0.0
      %552 = vmatpush2.msra.mxu0 0.0
      %553 = vmatprep.subr.mxu0 0.0
      %554 = vmatpush2.msra.mxu0 0.0
      %555 = vmatprep.subr.mxu0 0.0
      %556 = vmatpush2.msra.mxu0 0.0
      %557 = vmatprep.subr.mxu0 0.0
      %558 = vmatpush2.msra.mxu0 0.0
      %559 = vmatprep.subr.mxu0 0.0
      %560 = vmatpush2.msra.mxu0 0.0
      %561 = vmatprep.subr.mxu0 0.0
      %562 = vmatpush2.msra.mxu0 0.0
      %563 = vmatprep.mubr.f32.mxu0 0.0
      %564 = vmatmul.mubr.f32.gmra.mxu0 %v476
      %v565 = vpop.f32.mrf.mxu0
      %v566 = vadd.f32 %v437, %v565
      %v567 = vpop.f32.mrf.mxu0
      %568 = vmatprep.mubr.f32.mxu0 0.0
      %569 = vmatmul.mubr.f32.gmra.mxu0 %v479
      %v570 = vpop.f32.mrf.mxu0
      %v571 = vadd.f32 %v442, %v570
      %v572 = vpop.f32.mrf.mxu0
      %573 = vmatprep.mubr.f32.mxu0 0.0
      %574 = vmatmul.mubr.f32.gmra.mxu0 %v482
      %v575 = vpop.f32.mrf.mxu0
      %v576 = vadd.f32 %v447, %v575
      %v577 = vpop.f32.mrf.mxu0
      %578 = vmatprep.mubr.f32.mxu0 0.0
      %579 = vmatmul.mubr.f32.gmra.mxu0 %v485
      %v580 = vpop.f32.mrf.mxu0
      %v581 = vadd.f32 %v452, %v580
      %v582 = vpop.f32.mrf.mxu0
      %583 = vmatprep.mubr.f32.mxu0 0.0
      %584 = vmatmul.mubr.f32.gmra.mxu0 %v488
      %v585 = vpop.f32.mrf.mxu0
      %v586 = vadd.f32 %v457, %v585
      %v587 = vpop.f32.mrf.mxu0
      %588 = vmatprep.mubr.f32.mxu0 0.0
      %589 = vmatmul.mubr.f32.gmra.mxu0 %v491
      %v590 = vpop.f32.mrf.mxu0
      %v591 = vadd.f32 %v462, %v590
      %v592 = vpop.f32.mrf.mxu0
      %593 = vmatprep.mubr.f32.mxu0 0.0
      %594 = vmatmul.mubr.f32.gmra.mxu0 %v494
      %v595 = vpop.f32.mrf.mxu0
      %v596 = vadd.f32 %v467, %v595
      %v597 = vpop.f32.mrf.mxu0
      %598 = vmatprep.mubr.f32.mxu0 0.0
      %599 = vmatmul.mubr.f32.gmra.mxu0 %v497
      %v600 = vpop.f32.mrf.mxu0
      %v601 = vadd.f32 %v472, %v600
      %v602 = vpop.f32.mrf.mxu0
      %603 = vdwg.mxu0
      %v604 = vld [vmem:[%s9] sm:$0xff]
      %v605 = vld [vmem:[%s9 + $0x8] sm:$0xff]
      %v606 = vld [vmem:[%s9 + $0x10] sm:$0xff]
      %v607 = vld [vmem:[%s9 + $0x18] sm:$0xff]
      %v608 = vld [vmem:[%s3] sm:$0xff]
      %v609 = vld [vmem:[%s3 + $0x8] sm:$0xff]
      %v610 = vld [vmem:[%s3 + $0x10] sm:$0xff]
      %v611 = vld [vmem:[%s3 + $0x18] sm:$0xff]
      %v612 = vld [vmem:[%s4] sm:$0xff]
      %v613 = vld [vmem:[%s4 + $0x8] sm:$0xff]
      %v614 = vld [vmem:[%s4 + $0x10] sm:$0xff]
      %v615 = vld [vmem:[%s4 + $0x18] sm:$0xff]
      %616 = vadd.xlane.f32.xlu0 %v414
      %v617 = vpop.xlane.xlu0 %616
      %618 = vadd.xlane.f32.xlu0 %v415
      %v619 = vpop.xlane.xlu0 %618
      %620 = vadd.xlane.f32.xlu0 %v416
      %v621 = vpop.xlane.xlu0 %620
      %622 = vadd.xlane.f32.xlu0 %v417
      %v623 = vpop.xlane.xlu0 %622
      %v624 = vmul.f32 %v414, %v414
      %v625 = vmul.f32 %v415, %v415
      %v626 = vmul.f32 %v416, %v416
      %v627 = vmul.f32 %v417, %v417
      %628 = vadd.xlane.f32.xlu0 %v624
      %v629 = vpop.xlane.xlu0 %628
      %630 = vadd.xlane.f32.xlu0 %v625
      %v631 = vpop.xlane.xlu0 %630
      %632 = vadd.xlane.f32.xlu0 %v626
      %v633 = vpop.xlane.xlu0 %632
      %634 = vadd.xlane.f32.xlu0 %v627
      %v635 = vpop.xlane.xlu0 %634
      %v637 = vsel %vm474, %v604, 0
      %v640 = vsel %vm474, %v605, 0
      %v643 = vsel %vm474, %v606, 0
      %v646 = vsel %vm474, %v607, 0
      %648 = vmatprep.subr.mxu0 0.0
      %649 = vmatpush1.msra.mxu0 0.0
      %650 = vmatprep.subr.mxu0 0.0
      %651 = vmatpush1.msra.mxu0 0.0
      %652 = vmatprep.subr.mxu0 0.0
      %653 = vmatpush1.msra.mxu0 0.0
      %654 = vmatprep.subr.mxu0 0.0
      %655 = vmatpush1.msra.mxu0 0.0
      %656 = vmatprep.subr.mxu0 0.0
      %657 = vmatpush1.msra.mxu0 0.0
      %658 = vmatprep.subr.mxu0 0.0
      %659 = vmatpush1.msra.mxu0 0.0
      %660 = vmatprep.subr.mxu0 0.0
      %661 = vmatpush1.msra.mxu0 0.0
      %662 = vmatprep.subr.mxu0 0.0
      %663 = vmatpush1.msra.mxu0 0.0
      %664 = vmatprep.subr.mxu0 0.0
      %665 = vmatpush1.msra.mxu0 0.0
      %666 = vmatprep.subr.mxu0 0.0
      %667 = vmatpush1.msra.mxu0 0.0
      %668 = vmatprep.subr.mxu0 0.0
      %669 = vmatpush1.msra.mxu0 0.0
      %670 = vmatprep.subr.mxu0 0.0
      %671 = vmatpush1.msra.mxu0 0.0
      %672 = vmatprep.subr.mxu0 0.0
      %673 = vmatpush1.msra.mxu0 %v623
      %674 = vmatprep.subr.mxu0 0.0
      %675 = vmatpush1.msra.mxu0 %v621
      %676 = vmatprep.subr.mxu0 0.0
      %677 = vmatpush1.msra.mxu0 %v619
      %678 = vmatprep.subr.mxu0 0.0
      %679 = vmatpush1.msra.mxu0 %v617
      %680 = vmatprep.subr.mxu0 0.0
      %681 = vmatpush2.msra.mxu0 0.0
      %682 = vmatprep.subr.mxu0 0.0
      %683 = vmatpush2.msra.mxu0 0.0
      %684 = vmatprep.subr.mxu0 0.0
      %685 = vmatpush2.msra.mxu0 0.0
      %686 = vmatprep.subr.mxu0 0.0
      %687 = vmatpush2.msra.mxu0 0.0
      %688 = vmatprep.subr.mxu0 0.0
      %689 = vmatpush2.msra.mxu0 0.0
      %690 = vmatprep.subr.mxu0 0.0
      %691 = vmatpush2.msra.mxu0 0.0
      %692 = vmatprep.subr.mxu0 0.0
      %693 = vmatpush2.msra.mxu0 0.0
      %694 = vmatprep.subr.mxu0 0.0
      %695 = vmatpush2.msra.mxu0 0.0
      %696 = vmatprep.subr.mxu0 0.0
      %697 = vmatpush2.msra.mxu0 0.0
      %698 = vmatprep.subr.mxu0 0.0
      %699 = vmatpush2.msra.mxu0 0.0
      %700 = vmatprep.subr.mxu0 0.0
      %701 = vmatpush2.msra.mxu0 0.0
      %702 = vmatprep.subr.mxu0 0.0
      %703 = vmatpush2.msra.mxu0 0.0
      %704 = vmatprep.subr.mxu0 0.0
      %705 = vmatpush2.msra.mxu0 0.0
      %706 = vmatprep.subr.mxu0 0.0
      %707 = vmatpush2.msra.mxu0 0.0
      %708 = vmatprep.subr.mxu0 0.0
      %709 = vmatpush2.msra.mxu0 0.0
      %710 = vmatprep.subr.mxu0 0.0
      %711 = vmatpush2.msra.mxu0 0.0
      %712 = vmatprep.mubr.f32.mxu0 0.0
      %713 = vmatmul.mubr.f32.gmra.mxu0 %v637
      %v714 = vpop.f32.mrf.mxu0
      %v715 = vadd.f32 0.0, %v714
      %v716 = vpop.f32.mrf.mxu0
      %717 = vmatprep.mubr.f32.mxu0 0.0
      %718 = vmatmul.mubr.f32.gmra.mxu0 %v640
      %v719 = vpop.f32.mrf.mxu0
      %v720 = vadd.f32 0.0, %v719
      %v721 = vpop.f32.mrf.mxu0
      %722 = vmatprep.mubr.f32.mxu0 0.0
      %723 = vmatmul.mubr.f32.gmra.mxu0 %v643
      %v724 = vpop.f32.mrf.mxu0
      %v725 = vadd.f32 0.0, %v724
      %v726 = vpop.f32.mrf.mxu0
      %727 = vmatprep.mubr.f32.mxu0 0.0
      %728 = vmatmul.mubr.f32.gmra.mxu0 %v646
      %v729 = vpop.f32.mrf.mxu0
      %v730 = vadd.f32 0.0, %v729
      %v731 = vpop.f32.mrf.mxu0
      %732 = vdwg.mxu0
      %v733 = vmul.f32 %v715, 0.0078125
      %v734 = vmul.f32 %v720, 0.0078125
      %v735 = vmul.f32 %v725, 0.0078125
      %v736 = vmul.f32 %v730, 0.0078125
      %737 = vmatprep.subr.mxu0 0.0
      %738 = vmatpush1.msra.mxu0 0.0
      %739 = vmatprep.subr.mxu0 0.0
      %740 = vmatpush1.msra.mxu0 0.0
      %741 = vmatprep.subr.mxu0 0.0
      %742 = vmatpush1.msra.mxu0 0.0
      %743 = vmatprep.subr.mxu0 0.0
      %744 = vmatpush1.msra.mxu0 0.0
      %745 = vmatprep.subr.mxu0 0.0
      %746 = vmatpush1.msra.mxu0 0.0
      %747 = vmatprep.subr.mxu0 0.0
      %748 = vmatpush1.msra.mxu0 0.0
      %749 = vmatprep.subr.mxu0 0.0
      %750 = vmatpush1.msra.mxu0 0.0
      %751 = vmatprep.subr.mxu0 0.0
      %752 = vmatpush1.msra.mxu0 0.0
      %753 = vmatprep.subr.mxu0 0.0
      %754 = vmatpush1.msra.mxu0 0.0
      %755 = vmatprep.subr.mxu0 0.0
      %756 = vmatpush1.msra.mxu0 0.0
      %757 = vmatprep.subr.mxu0 0.0
      %758 = vmatpush1.msra.mxu0 0.0
      %759 = vmatprep.subr.mxu0 0.0
      %760 = vmatpush1.msra.mxu0 0.0
      %761 = vmatprep.subr.mxu0 0.0
      %762 = vmatpush1.msra.mxu0 %v635
      %763 = vmatprep.subr.mxu0 0.0
      %764 = vmatpush1.msra.mxu0 %v633
      %765 = vmatprep.subr.mxu0 0.0
      %766 = vmatpush1.msra.mxu0 %v631
      %767 = vmatprep.subr.mxu0 0.0
      %768 = vmatpush1.msra.mxu0 %v629
      %769 = vmatprep.subr.mxu0 0.0
      %770 = vmatpush2.msra.mxu0 0.0
      %771 = vmatprep.subr.mxu0 0.0
      %772 = vmatpush2.msra.mxu0 0.0
      %773 = vmatprep.subr.mxu0 0.0
      %774 = vmatpush2.msra.mxu0 0.0
      %775 = vmatprep.subr.mxu0 0.0
      %776 = vmatpush2.msra.mxu0 0.0
      %777 = vmatprep.subr.mxu0 0.0
      %778 = vmatpush2.msra.mxu0 0.0
      %779 = vmatprep.subr.mxu0 0.0
      %780 = vmatpush2.msra.mxu0 0.0
      %781 = vmatprep.subr.mxu0 0.0
      %782 = vmatpush2.msra.mxu0 0.0
      %783 = vmatprep.subr.mxu0 0.0
      %784 = vmatpush2.msra.mxu0 0.0
      %785 = vmatprep.subr.mxu0 0.0
      %786 = vmatpush2.msra.mxu0 0.0
      %787 = vmatprep.subr.mxu0 0.0
      %788 = vmatpush2.msra.mxu0 0.0
      %789 = vmatprep.subr.mxu0 0.0
      %790 = vmatpush2.msra.mxu0 0.0
      %791 = vmatprep.subr.mxu0 0.0
      %792 = vmatpush2.msra.mxu0 0.0
      %793 = vmatprep.subr.mxu0 0.0
      %794 = vmatpush2.msra.mxu0 0.0
      %795 = vmatprep.subr.mxu0 0.0
      %796 = vmatpush2.msra.mxu0 0.0
      %797 = vmatprep.subr.mxu0 0.0
      %798 = vmatpush2.msra.mxu0 0.0
      %799 = vmatprep.subr.mxu0 0.0
      %800 = vmatpush2.msra.mxu0 0.0
      %801 = vmatprep.mubr.f32.mxu0 0.0
      %802 = vmatmul.mubr.f32.gmra.mxu0 %v637
      %v803 = vpop.f32.mrf.mxu0
      %v804 = vadd.f32 0.0, %v803
      %v805 = vpop.f32.mrf.mxu0
      %806 = vmatprep.mubr.f32.mxu0 0.0
      %807 = vmatmul.mubr.f32.gmra.mxu0 %v640
      %v808 = vpop.f32.mrf.mxu0
      %v809 = vadd.f32 0.0, %v808
      %v810 = vpop.f32.mrf.mxu0
      %811 = vmatprep.mubr.f32.mxu0 0.0
      %812 = vmatmul.mubr.f32.gmra.mxu0 %v643
      %v813 = vpop.f32.mrf.mxu0
      %v814 = vadd.f32 0.0, %v813
      %v815 = vpop.f32.mrf.mxu0
      %816 = vmatprep.mubr.f32.mxu0 0.0
      %817 = vmatmul.mubr.f32.gmra.mxu0 %v646
      %v818 = vpop.f32.mrf.mxu0
      %v819 = vadd.f32 0.0, %v818
      %v820 = vpop.f32.mrf.mxu0
      %821 = vdwg.mxu0
      %v822 = vmul.f32 %v804, 0.0078125
      %v823 = vmul.f32 %v809, 0.0078125
      %v824 = vmul.f32 %v814, 0.0078125
      %v825 = vmul.f32 %v819, 0.0078125
      %v826 = vmul.f32 %v733, %v733
      %v827 = vmul.f32 %v734, %v734
      %v828 = vmul.f32 %v735, %v735
      %v829 = vmul.f32 %v736, %v736
      %v830 = vsub.f32 %v822, %v826
      %v831 = vsub.f32 %v823, %v827
      %v832 = vsub.f32 %v824, %v828
      %v833 = vsub.f32 %v825, %v829
      %v834 = vadd.f32 %v830, 1e-05
      %v835 = vadd.f32 %v831, 1e-05
      %v836 = vadd.f32 %v832, 1e-05
      %v837 = vadd.f32 %v833, 1e-05
      %v838 = vrsqrt.pop %v834
      %v839 = vrsqrt.pop %v835
      %v840 = vrsqrt.pop %v836
      %v841 = vrsqrt.pop %v837
      %843 = vset.pattern.permute.xlu0 0
      %844 = vperm.xlu0 %843, %v733
      %v845 = vpop.permute.xlu0 %844
      %848 = vset.pattern.permute.xlu0 0
      %849 = vperm.xlu0 %848, %v734
      %v850 = vpop.permute.xlu0 %849
      %853 = vset.pattern.permute.xlu0 0
      %854 = vperm.xlu0 %853, %v735
      %v855 = vpop.permute.xlu0 %854
      %858 = vset.pattern.permute.xlu0 0
      %859 = vperm.xlu0 %858, %v736
      %v860 = vpop.permute.xlu0 %859
      %v862 = vsub.f32 %v414, %v845
      %v863 = vsub.f32 %v415, %v850
      %v864 = vsub.f32 %v416, %v855
      %v865 = vsub.f32 %v417, %v860
      %867 = vset.pattern.permute.xlu0 0
      %868 = vperm.xlu0 %867, %v838
      %v869 = vpop.permute.xlu0 %868
      %872 = vset.pattern.permute.xlu0 0
      %873 = vperm.xlu0 %872, %v839
      %v874 = vpop.permute.xlu0 %873
      %877 = vset.pattern.permute.xlu0 0
      %878 = vperm.xlu0 %877, %v840
      %v879 = vpop.permute.xlu0 %878
      %882 = vset.pattern.permute.xlu0 0
      %883 = vperm.xlu0 %882, %v841
      %v884 = vpop.permute.xlu0 %883
      %v886 = vmul.f32 %v862, %v869
      %v887 = vmul.f32 %v863, %v874
      %v888 = vmul.f32 %v864, %v879
      %v889 = vmul.f32 %v865, %v884
      %891 = vset.pattern.permute.xlu0 0
      %892 = vperm.xlu0 %891, %v608
      %v893 = vpop.permute.xlu0 %892
      %896 = vset.pattern.permute.xlu0 0
      %897 = vperm.xlu0 %896, %v609
      %v898 = vpop.permute.xlu0 %897
      %901 = vset.pattern.permute.xlu0 0
      %902 = vperm.xlu0 %901, %v610
      %v903 = vpop.permute.xlu0 %902
      %906 = vset.pattern.permute.xlu0 0
      %907 = vperm.xlu0 %906, %v611
      %v908 = vpop.permute.xlu0 %907
      %v910 = vmul.f32 %v886, %v893
      %v911 = vmul.f32 %v887, %v898
      %v912 = vmul.f32 %v888, %v903
      %v913 = vmul.f32 %v889, %v908
      %915 = vset.pattern.permute.xlu0 0
      %916 = vperm.xlu0 %915, %v612
      %v917 = vpop.permute.xlu0 %916
      %920 = vset.pattern.permute.xlu0 0
      %921 = vperm.xlu0 %920, %v613
      %v922 = vpop.permute.xlu0 %921
      %925 = vset.pattern.permute.xlu0 0
      %926 = vperm.xlu0 %925, %v614
      %v927 = vpop.permute.xlu0 %926
      %930 = vset.pattern.permute.xlu0 0
      %931 = vperm.xlu0 %930, %v615
      %v932 = vpop.permute.xlu0 %931
      %v934 = vadd.f32 %v910, %v917
      %v935 = vadd.f32 %v911, %v922
      %v936 = vadd.f32 %v912, %v927
      %v937 = vadd.f32 %v913, %v932
      %v938 = vxor.u32 %v934, 2147483648
      %v939 = vxor.u32 %v935, 2147483648
      %v940 = vxor.u32 %v936, 2147483648
      %v941 = vxor.u32 %v937, 2147483648
      %v942 = vmul.f32 %v938, 1.442695
      %v943 = vpow.pop %v942
      %v944 = vmul.f32 %v939, 1.442695
      %v945 = vpow.pop %v944
      %v946 = vmul.f32 %v940, 1.442695
      %v947 = vpow.pop %v946
      %v948 = vmul.f32 %v941, 1.442695
      %v949 = vpow.pop %v948
      %v950 = vadd.f32 %v943, 1.0
      %v951 = vadd.f32 %v945, 1.0
      %v952 = vadd.f32 %v947, 1.0
      %v953 = vadd.f32 %v949, 1.0
      %v954 = vrcp.pop %v950
      %v955 = vmul.f32 1.0, %v954
      %v956 = vrcp.pop %v951
      %v957 = vmul.f32 1.0, %v956
      %v958 = vrcp.pop %v952
      %v959 = vmul.f32 1.0, %v958
      %v960 = vrcp.pop %v953
      %v961 = vmul.f32 1.0, %v960
      %v962 = vmul.f32 %v934, %v955
      %v963 = vmul.f32 %v935, %v957
      %v964 = vmul.f32 %v936, %v959
      %v965 = vmul.f32 %v937, %v961
      %v966 = vld [vmem:[%s5] sm:$0xff]
      %v967 = vld [vmem:[%s5 + $0x8] sm:$0xff]
      %v968 = vld [vmem:[%s5 + $0x10] sm:$0xff]
      %v969 = vld [vmem:[%s5 + $0x18] sm:$0xff]
      %v970 = vld [vmem:[%s5 + $0x20] sm:$0xff]
      %v971 = vld [vmem:[%s5 + $0x28] sm:$0xff]
      %v972 = vld [vmem:[%s5 + $0x30] sm:$0xff]
      %v973 = vld [vmem:[%s5 + $0x38] sm:$0xff]
      %v974 = vlaneseq
      %v975 = vand.u32 %v974, 127
      %vm976 = vcmp.eq.s32.totalorder %v975, 0
      %977 = vrot.lane.b32.xlu0 %v962, 1
      %v978 = vpop.permute.xlu0 %977
      %979 = vrot.lane.b32.xlu0 %v963, 1
      %v980 = vpop.permute.xlu0 %979
      %981 = vrot.lane.b32.xlu0 %v964, 1
      %v982 = vpop.permute.xlu0 %981
      %983 = vrot.lane.b32.xlu0 %v965, 1
      %v984 = vpop.permute.xlu0 %983
      %v985 = vsel %vm976, 0.0, %v978
      %v986 = vsel %vm976, 0.0, %v980
      %v987 = vsel %vm976, 0.0, %v982
      %v988 = vsel %vm976, 0.0, %v984
      %vm989 = vcmp.eq.s32.totalorder %v975, 127
      %990 = vrot.lane.b32.xlu0 %v962, 127
      %v991 = vpop.permute.xlu0 %990
      %992 = vrot.lane.b32.xlu0 %v963, 127
      %v993 = vpop.permute.xlu0 %992
      %994 = vrot.lane.b32.xlu0 %v964, 127
      %v995 = vpop.permute.xlu0 %994
      %996 = vrot.lane.b32.xlu0 %v965, 127
      %v997 = vpop.permute.xlu0 %996
      %v998 = vsel %vm989, 0.0, %v991
      %v999 = vsel %vm989, 0.0, %v993
      %v1000 = vsel %vm989, 0.0, %v995
      %v1001 = vsel %vm989, 0.0, %v997
      %vm1002 = vcmask 785408
      %v1004 = vsel %vm1002, %v966, 0
      %v1007 = vsel %vm1002, %v967, 0
      %v1010 = vsel %vm1002, %v968, 0
      %v1013 = vsel %vm1002, %v969, 0
      %v1016 = vsel %vm1002, %v970, 0
      %v1019 = vsel %vm1002, %v971, 0
      %v1022 = vsel %vm1002, %v972, 0
      %v1025 = vsel %vm1002, %v973, 0
      %1027 = vmatprep.subr.mxu0 0.0
      %1028 = vmatpush1.msra.mxu0 0.0
      %1029 = vmatprep.subr.mxu0 0.0
      %1030 = vmatpush1.msra.mxu0 0.0
      %1031 = vmatprep.subr.mxu0 0.0
      %1032 = vmatpush1.msra.mxu0 0.0
      %1033 = vmatprep.subr.mxu0 0.0
      %1034 = vmatpush1.msra.mxu0 0.0
      %1035 = vmatprep.subr.mxu0 0.0
      %1036 = vmatpush1.msra.mxu0 %v1001
      %1037 = vmatprep.subr.mxu0 0.0
      %1038 = vmatpush1.msra.mxu0 %v1000
      %1039 = vmatprep.subr.mxu0 0.0
      %1040 = vmatpush1.msra.mxu0 %v999
      %1041 = vmatprep.subr.mxu0 0.0
      %1042 = vmatpush1.msra.mxu0 %v998
      %1043 = vmatprep.subr.mxu0 0.0
      %1044 = vmatpush1.msra.mxu0 %v965
      %1045 = vmatprep.subr.mxu0 0.0
      %1046 = vmatpush1.msra.mxu0 %v964
      %1047 = vmatprep.subr.mxu0 0.0
      %1048 = vmatpush1.msra.mxu0 %v963
      %1049 = vmatprep.subr.mxu0 0.0
      %1050 = vmatpush1.msra.mxu0 %v962
      %1051 = vmatprep.subr.mxu0 0.0
      %1052 = vmatpush1.msra.mxu0 %v988
      %1053 = vmatprep.subr.mxu0 0.0
      %1054 = vmatpush1.msra.mxu0 %v987
      %1055 = vmatprep.subr.mxu0 0.0
      %1056 = vmatpush1.msra.mxu0 %v986
      %1057 = vmatprep.subr.mxu0 0.0
      %1058 = vmatpush1.msra.mxu0 %v985
      %1059 = vmatprep.subr.mxu0 0.0
      %1060 = vmatpush2.msra.mxu0 0.0
      %1061 = vmatprep.subr.mxu0 0.0
      %1062 = vmatpush2.msra.mxu0 0.0
      %1063 = vmatprep.subr.mxu0 0.0
      %1064 = vmatpush2.msra.mxu0 0.0
      %1065 = vmatprep.subr.mxu0 0.0
      %1066 = vmatpush2.msra.mxu0 0.0
      %1067 = vmatprep.subr.mxu0 0.0
      %1068 = vmatpush2.msra.mxu0 0.0
      %1069 = vmatprep.subr.mxu0 0.0
      %1070 = vmatpush2.msra.mxu0 0.0
      %1071 = vmatprep.subr.mxu0 0.0
      %1072 = vmatpush2.msra.mxu0 0.0
      %1073 = vmatprep.subr.mxu0 0.0
      %1074 = vmatpush2.msra.mxu0 0.0
      %1075 = vmatprep.subr.mxu0 0.0
      %1076 = vmatpush2.msra.mxu0 0.0
      %1077 = vmatprep.subr.mxu0 0.0
      %1078 = vmatpush2.msra.mxu0 0.0
      %1079 = vmatprep.subr.mxu0 0.0
      %1080 = vmatpush2.msra.mxu0 0.0
      %1081 = vmatprep.subr.mxu0 0.0
      %1082 = vmatpush2.msra.mxu0 0.0
      %1083 = vmatprep.subr.mxu0 0.0
      %1084 = vmatpush2.msra.mxu0 0.0
      %1085 = vmatprep.subr.mxu0 0.0
      %1086 = vmatpush2.msra.mxu0 0.0
      %1087 = vmatprep.subr.mxu0 0.0
      %1088 = vmatpush2.msra.mxu0 0.0
      %1089 = vmatprep.subr.mxu0 0.0
      %1090 = vmatpush2.msra.mxu0 0.0
      %1091 = vmatprep.mubr.f32.mxu0 0.0
      %1092 = vmatmul.mubr.f32.gmra.mxu0 %v1004
      %v1093 = vpop.f32.mrf.mxu0
      %v1094 = vadd.f32 0.0, %v1093
      %v1095 = vpop.f32.mrf.mxu0
      %1096 = vmatprep.mubr.f32.mxu0 0.0
      %1097 = vmatmul.mubr.f32.gmra.mxu0 %v1007
      %v1098 = vpop.f32.mrf.mxu0
      %v1099 = vadd.f32 0.0, %v1098
      %v1100 = vpop.f32.mrf.mxu0
      %1101 = vmatprep.mubr.f32.mxu0 0.0
      %1102 = vmatmul.mubr.f32.gmra.mxu0 %v1010
      %v1103 = vpop.f32.mrf.mxu0
      %v1104 = vadd.f32 0.0, %v1103
      %v1105 = vpop.f32.mrf.mxu0
      %1106 = vmatprep.mubr.f32.mxu0 0.0
      %1107 = vmatmul.mubr.f32.gmra.mxu0 %v1013
      %v1108 = vpop.f32.mrf.mxu0
      %v1109 = vadd.f32 0.0, %v1108
      %v1110 = vpop.f32.mrf.mxu0
      %1111 = vmatprep.mubr.f32.mxu0 0.0
      %1112 = vmatmul.mubr.f32.gmra.mxu0 %v1016
      %v1113 = vpop.f32.mrf.mxu0
      %v1114 = vadd.f32 0.0, %v1113
      %v1115 = vpop.f32.mrf.mxu0
      %1116 = vmatprep.mubr.f32.mxu0 0.0
      %1117 = vmatmul.mubr.f32.gmra.mxu0 %v1019
      %v1118 = vpop.f32.mrf.mxu0
      %v1119 = vadd.f32 0.0, %v1118
      %v1120 = vpop.f32.mrf.mxu0
      %1121 = vmatprep.mubr.f32.mxu0 0.0
      %1122 = vmatmul.mubr.f32.gmra.mxu0 %v1022
      %v1123 = vpop.f32.mrf.mxu0
      %v1124 = vadd.f32 0.0, %v1123
      %v1125 = vpop.f32.mrf.mxu0
      %1126 = vmatprep.mubr.f32.mxu0 0.0
      %1127 = vmatmul.mubr.f32.gmra.mxu0 %v1025
      %v1128 = vpop.f32.mrf.mxu0
      %v1129 = vadd.f32 0.0, %v1128
      %v1130 = vpop.f32.mrf.mxu0
      %1131 = vdwg.mxu0
      %v1132 = vld [vmem:[%s10] sm:$0xff]
      %v1133 = vld [vmem:[%s10 + $0x8] sm:$0xff]
      %v1134 = vld [vmem:[%s10 + $0x10] sm:$0xff]
      %v1135 = vld [vmem:[%s10 + $0x18] sm:$0xff]
      %v1136 = vld [vmem:[%s10 + $0x20] sm:$0xff]
      %v1137 = vld [vmem:[%s10 + $0x28] sm:$0xff]
      %v1138 = vld [vmem:[%s10 + $0x30] sm:$0xff]
      %v1139 = vld [vmem:[%s10 + $0x38] sm:$0xff]
      %v1140 = vld [vmem:[%s6] sm:$0xff]
      %v1141 = vld [vmem:[%s6 + $0x8] sm:$0xff]
      %v1142 = vld [vmem:[%s6 + $0x10] sm:$0xff]
      %v1143 = vld [vmem:[%s6 + $0x18] sm:$0xff]
      %v1144 = vld [vmem:[%s6 + $0x20] sm:$0xff]
      %v1145 = vld [vmem:[%s6 + $0x28] sm:$0xff]
      %v1146 = vld [vmem:[%s6 + $0x30] sm:$0xff]
      %v1147 = vld [vmem:[%s6 + $0x38] sm:$0xff]
      %v1148 = vld [vmem:[%s7] sm:$0xff]
      %v1149 = vld [vmem:[%s7 + $0x8] sm:$0xff]
      %v1150 = vld [vmem:[%s7 + $0x10] sm:$0xff]
      %v1151 = vld [vmem:[%s7 + $0x18] sm:$0xff]
      %v1152 = vld [vmem:[%s7 + $0x20] sm:$0xff]
      %v1153 = vld [vmem:[%s7 + $0x28] sm:$0xff]
      %v1154 = vld [vmem:[%s7 + $0x30] sm:$0xff]
      %v1155 = vld [vmem:[%s7 + $0x38] sm:$0xff]
      %1156 = vadd.xlane.f32.xlu0 %v1094
      %v1157 = vpop.xlane.xlu0 %1156
      %1158 = vadd.xlane.f32.xlu0 %v1099
      %v1159 = vpop.xlane.xlu0 %1158
      %1160 = vadd.xlane.f32.xlu0 %v1104
      %v1161 = vpop.xlane.xlu0 %1160
      %1162 = vadd.xlane.f32.xlu0 %v1109
      %v1163 = vpop.xlane.xlu0 %1162
      %1164 = vadd.xlane.f32.xlu0 %v1114
      %v1165 = vpop.xlane.xlu0 %1164
      %1166 = vadd.xlane.f32.xlu0 %v1119
      %v1167 = vpop.xlane.xlu0 %1166
      %1168 = vadd.xlane.f32.xlu0 %v1124
      %v1169 = vpop.xlane.xlu0 %1168
      %1170 = vadd.xlane.f32.xlu0 %v1129
      %v1171 = vpop.xlane.xlu0 %1170
      %v1172 = vmul.f32 %v1094, %v1094
      %v1173 = vmul.f32 %v1099, %v1099
      %v1174 = vmul.f32 %v1104, %v1104
      %v1175 = vmul.f32 %v1109, %v1109
      %v1176 = vmul.f32 %v1114, %v1114
      %v1177 = vmul.f32 %v1119, %v1119
      %v1178 = vmul.f32 %v1124, %v1124
      %v1179 = vmul.f32 %v1129, %v1129
      %1180 = vadd.xlane.f32.xlu0 %v1172
      %v1181 = vpop.xlane.xlu0 %1180
      %1182 = vadd.xlane.f32.xlu0 %v1173
      %v1183 = vpop.xlane.xlu0 %1182
      %1184 = vadd.xlane.f32.xlu0 %v1174
      %v1185 = vpop.xlane.xlu0 %1184
      %1186 = vadd.xlane.f32.xlu0 %v1175
      %v1187 = vpop.xlane.xlu0 %1186
      %1188 = vadd.xlane.f32.xlu0 %v1176
      %v1189 = vpop.xlane.xlu0 %1188
      %1190 = vadd.xlane.f32.xlu0 %v1177
      %v1191 = vpop.xlane.xlu0 %1190
      %1192 = vadd.xlane.f32.xlu0 %v1178
      %v1193 = vpop.xlane.xlu0 %1192
      %1194 = vadd.xlane.f32.xlu0 %v1179
      %v1195 = vpop.xlane.xlu0 %1194
      %vm1196 = vcmask 523264
      %v1198 = vsel %vm1196, %v1132, 0
      %v1201 = vsel %vm1196, %v1133, 0
      %v1204 = vsel %vm1196, %v1134, 0
      %v1207 = vsel %vm1196, %v1135, 0
      %v1210 = vsel %vm1196, %v1136, 0
      %v1213 = vsel %vm1196, %v1137, 0
      %v1216 = vsel %vm1196, %v1138, 0
      %v1219 = vsel %vm1196, %v1139, 0
      %1221 = vmatprep.subr.mxu0 0.0
      %1222 = vmatpush1.msra.mxu0 0.0
      %1223 = vmatprep.subr.mxu0 0.0
      %1224 = vmatpush1.msra.mxu0 0.0
      %1225 = vmatprep.subr.mxu0 0.0
      %1226 = vmatpush1.msra.mxu0 0.0
      %1227 = vmatprep.subr.mxu0 0.0
      %1228 = vmatpush1.msra.mxu0 0.0
      %1229 = vmatprep.subr.mxu0 0.0
      %1230 = vmatpush1.msra.mxu0 0.0
      %1231 = vmatprep.subr.mxu0 0.0
      %1232 = vmatpush1.msra.mxu0 0.0
      %1233 = vmatprep.subr.mxu0 0.0
      %1234 = vmatpush1.msra.mxu0 0.0
      %1235 = vmatprep.subr.mxu0 0.0
      %1236 = vmatpush1.msra.mxu0 0.0
      %1237 = vmatprep.subr.mxu0 0.0
      %1238 = vmatpush1.msra.mxu0 %v1171
      %1239 = vmatprep.subr.mxu0 0.0
      %1240 = vmatpush1.msra.mxu0 %v1169
      %1241 = vmatprep.subr.mxu0 0.0
      %1242 = vmatpush1.msra.mxu0 %v1167
      %1243 = vmatprep.subr.mxu0 0.0
      %1244 = vmatpush1.msra.mxu0 %v1165
      %1245 = vmatprep.subr.mxu0 0.0
      %1246 = vmatpush1.msra.mxu0 %v1163
      %1247 = vmatprep.subr.mxu0 0.0
      %1248 = vmatpush1.msra.mxu0 %v1161
      %1249 = vmatprep.subr.mxu0 0.0
      %1250 = vmatpush1.msra.mxu0 %v1159
      %1251 = vmatprep.subr.mxu0 0.0
      %1252 = vmatpush1.msra.mxu0 %v1157
      %1253 = vmatprep.subr.mxu0 0.0
      %1254 = vmatpush2.msra.mxu0 0.0
      %1255 = vmatprep.subr.mxu0 0.0
      %1256 = vmatpush2.msra.mxu0 0.0
      %1257 = vmatprep.subr.mxu0 0.0
      %1258 = vmatpush2.msra.mxu0 0.0
      %1259 = vmatprep.subr.mxu0 0.0
      %1260 = vmatpush2.msra.mxu0 0.0
      %1261 = vmatprep.subr.mxu0 0.0
      %1262 = vmatpush2.msra.mxu0 0.0
      %1263 = vmatprep.subr.mxu0 0.0
      %1264 = vmatpush2.msra.mxu0 0.0
      %1265 = vmatprep.subr.mxu0 0.0
      %1266 = vmatpush2.msra.mxu0 0.0
      %1267 = vmatprep.subr.mxu0 0.0
      %1268 = vmatpush2.msra.mxu0 0.0
      %1269 = vmatprep.subr.mxu0 0.0
      %1270 = vmatpush2.msra.mxu0 0.0
      %1271 = vmatprep.subr.mxu0 0.0
      %1272 = vmatpush2.msra.mxu0 0.0
      %1273 = vmatprep.subr.mxu0 0.0
      %1274 = vmatpush2.msra.mxu0 0.0
      %1275 = vmatprep.subr.mxu0 0.0
      %1276 = vmatpush2.msra.mxu0 0.0
      %1277 = vmatprep.subr.mxu0 0.0
      %1278 = vmatpush2.msra.mxu0 0.0
      %1279 = vmatprep.subr.mxu0 0.0
      %1280 = vmatpush2.msra.mxu0 0.0
      %1281 = vmatprep.subr.mxu0 0.0
      %1282 = vmatpush2.msra.mxu0 0.0
      %1283 = vmatprep.subr.mxu0 0.0
      %1284 = vmatpush2.msra.mxu0 0.0
      %1285 = vmatprep.mubr.f32.mxu0 0.0
      %1286 = vmatmul.mubr.f32.gmra.mxu0 %v1198
      %v1287 = vpop.f32.mrf.mxu0
      %v1288 = vadd.f32 0.0, %v1287
      %v1289 = vpop.f32.mrf.mxu0
      %1290 = vmatprep.mubr.f32.mxu0 0.0
      %1291 = vmatmul.mubr.f32.gmra.mxu0 %v1201
      %v1292 = vpop.f32.mrf.mxu0
      %v1293 = vadd.f32 0.0, %v1292
      %v1294 = vpop.f32.mrf.mxu0
      %1295 = vmatprep.mubr.f32.mxu0 0.0
      %1296 = vmatmul.mubr.f32.gmra.mxu0 %v1204
      %v1297 = vpop.f32.mrf.mxu0
      %v1298 = vadd.f32 0.0, %v1297
      %v1299 = vpop.f32.mrf.mxu0
      %1300 = vmatprep.mubr.f32.mxu0 0.0
      %1301 = vmatmul.mubr.f32.gmra.mxu0 %v1207
      %v1302 = vpop.f32.mrf.mxu0
      %v1303 = vadd.f32 0.0, %v1302
      %v1304 = vpop.f32.mrf.mxu0
      %1305 = vmatprep.mubr.f32.mxu0 0.0
      %1306 = vmatmul.mubr.f32.gmra.mxu0 %v1210
      %v1307 = vpop.f32.mrf.mxu0
      %v1308 = vadd.f32 0.0, %v1307
      %v1309 = vpop.f32.mrf.mxu0
      %1310 = vmatprep.mubr.f32.mxu0 0.0
      %1311 = vmatmul.mubr.f32.gmra.mxu0 %v1213
      %v1312 = vpop.f32.mrf.mxu0
      %v1313 = vadd.f32 0.0, %v1312
      %v1314 = vpop.f32.mrf.mxu0
      %1315 = vmatprep.mubr.f32.mxu0 0.0
      %1316 = vmatmul.mubr.f32.gmra.mxu0 %v1216
      %v1317 = vpop.f32.mrf.mxu0
      %v1318 = vadd.f32 0.0, %v1317
      %v1319 = vpop.f32.mrf.mxu0
      %1320 = vmatprep.mubr.f32.mxu0 0.0
      %1321 = vmatmul.mubr.f32.gmra.mxu0 %v1219
      %v1322 = vpop.f32.mrf.mxu0
      %v1323 = vadd.f32 0.0, %v1322
      %v1324 = vpop.f32.mrf.mxu0
      %1325 = vdwg.mxu0
      %v1326 = vmul.f32 %v1288, 0.00390625
      %v1327 = vmul.f32 %v1293, 0.00390625
      %v1328 = vmul.f32 %v1298, 0.00390625
      %v1329 = vmul.f32 %v1303, 0.00390625
      %v1330 = vmul.f32 %v1308, 0.00390625
      %v1331 = vmul.f32 %v1313, 0.00390625
      %v1332 = vmul.f32 %v1318, 0.00390625
      %v1333 = vmul.f32 %v1323, 0.00390625
      %1334 = vmatprep.subr.mxu0 0.0
      %1335 = vmatpush1.msra.mxu0 0.0
      %1336 = vmatprep.subr.mxu0 0.0
      %1337 = vmatpush1.msra.mxu0 0.0
      %1338 = vmatprep.subr.mxu0 0.0
      %1339 = vmatpush1.msra.mxu0 0.0
      %1340 = vmatprep.subr.mxu0 0.0
      %1341 = vmatpush1.msra.mxu0 0.0
      %1342 = vmatprep.subr.mxu0 0.0
      %1343 = vmatpush1.msra.mxu0 0.0
      %1344 = vmatprep.subr.mxu0 0.0
      %1345 = vmatpush1.msra.mxu0 0.0
      %1346 = vmatprep.subr.mxu0 0.0
      %1347 = vmatpush1.msra.mxu0 0.0
      %1348 = vmatprep.subr.mxu0 0.0
      %1349 = vmatpush1.msra.mxu0 0.0
      %1350 = vmatprep.subr.mxu0 0.0
      %1351 = vmatpush1.msra.mxu0 %v1195
      %1352 = vmatprep.subr.mxu0 0.0
      %1353 = vmatpush1.msra.mxu0 %v1193
      %1354 = vmatprep.subr.mxu0 0.0
      %1355 = vmatpush1.msra.mxu0 %v1191
      %1356 = vmatprep.subr.mxu0 0.0
      %1357 = vmatpush1.msra.mxu0 %v1189
      %1358 = vmatprep.subr.mxu0 0.0
      %1359 = vmatpush1.msra.mxu0 %v1187
      %1360 = vmatprep.subr.mxu0 0.0
      %1361 = vmatpush1.msra.mxu0 %v1185
      %1362 = vmatprep.subr.mxu0 0.0
      %1363 = vmatpush1.msra.mxu0 %v1183
      %1364 = vmatprep.subr.mxu0 0.0
      %1365 = vmatpush1.msra.mxu0 %v1181
      %1366 = vmatprep.subr.mxu0 0.0
      %1367 = vmatpush2.msra.mxu0 0.0
      %1368 = vmatprep.subr.mxu0 0.0
      %1369 = vmatpush2.msra.mxu0 0.0
      %1370 = vmatprep.subr.mxu0 0.0
      %1371 = vmatpush2.msra.mxu0 0.0
      %1372 = vmatprep.subr.mxu0 0.0
      %1373 = vmatpush2.msra.mxu0 0.0
      %1374 = vmatprep.subr.mxu0 0.0
      %1375 = vmatpush2.msra.mxu0 0.0
      %1376 = vmatprep.subr.mxu0 0.0
      %1377 = vmatpush2.msra.mxu0 0.0
      %1378 = vmatprep.subr.mxu0 0.0
      %1379 = vmatpush2.msra.mxu0 0.0
      %1380 = vmatprep.subr.mxu0 0.0
      %1381 = vmatpush2.msra.mxu0 0.0
      %1382 = vmatprep.subr.mxu0 0.0
      %1383 = vmatpush2.msra.mxu0 0.0
      %1384 = vmatprep.subr.mxu0 0.0
      %1385 = vmatpush2.msra.mxu0 0.0
      %1386 = vmatprep.subr.mxu0 0.0
      %1387 = vmatpush2.msra.mxu0 0.0
      %1388 = vmatprep.subr.mxu0 0.0
      %1389 = vmatpush2.msra.mxu0 0.0
      %1390 = vmatprep.subr.mxu0 0.0
      %1391 = vmatpush2.msra.mxu0 0.0
      %1392 = vmatprep.subr.mxu0 0.0
      %1393 = vmatpush2.msra.mxu0 0.0
      %1394 = vmatprep.subr.mxu0 0.0
      %1395 = vmatpush2.msra.mxu0 0.0
      %1396 = vmatprep.subr.mxu0 0.0
      %1397 = vmatpush2.msra.mxu0 0.0
      %1398 = vmatprep.mubr.f32.mxu0 0.0
      %1399 = vmatmul.mubr.f32.gmra.mxu0 %v1198
      %v1400 = vpop.f32.mrf.mxu0
      %v1401 = vadd.f32 0.0, %v1400
      %v1402 = vpop.f32.mrf.mxu0
      %1403 = vmatprep.mubr.f32.mxu0 0.0
      %1404 = vmatmul.mubr.f32.gmra.mxu0 %v1201
      %v1405 = vpop.f32.mrf.mxu0
      %v1406 = vadd.f32 0.0, %v1405
      %v1407 = vpop.f32.mrf.mxu0
      %1408 = vmatprep.mubr.f32.mxu0 0.0
      %1409 = vmatmul.mubr.f32.gmra.mxu0 %v1204
      %v1410 = vpop.f32.mrf.mxu0
      %v1411 = vadd.f32 0.0, %v1410
      %v1412 = vpop.f32.mrf.mxu0
      %1413 = vmatprep.mubr.f32.mxu0 0.0
      %1414 = vmatmul.mubr.f32.gmra.mxu0 %v1207
      %v1415 = vpop.f32.mrf.mxu0
      %v1416 = vadd.f32 0.0, %v1415
      %v1417 = vpop.f32.mrf.mxu0
      %1418 = vmatprep.mubr.f32.mxu0 0.0
      %1419 = vmatmul.mubr.f32.gmra.mxu0 %v1210
      %v1420 = vpop.f32.mrf.mxu0
      %v1421 = vadd.f32 0.0, %v1420
      %v1422 = vpop.f32.mrf.mxu0
      %1423 = vmatprep.mubr.f32.mxu0 0.0
      %1424 = vmatmul.mubr.f32.gmra.mxu0 %v1213
      %v1425 = vpop.f32.mrf.mxu0
      %v1426 = vadd.f32 0.0, %v1425
      %v1427 = vpop.f32.mrf.mxu0
      %1428 = vmatprep.mubr.f32.mxu0 0.0
      %1429 = vmatmul.mubr.f32.gmra.mxu0 %v1216
      %v1430 = vpop.f32.mrf.mxu0
      %v1431 = vadd.f32 0.0, %v1430
      %v1432 = vpop.f32.mrf.mxu0
      %1433 = vmatprep.mubr.f32.mxu0 0.0
      %1434 = vmatmul.mubr.f32.gmra.mxu0 %v1219
      %v1435 = vpop.f32.mrf.mxu0
      %v1436 = vadd.f32 0.0, %v1435
      %v1437 = vpop.f32.mrf.mxu0
      %1438 = vdwg.mxu0
      %v1439 = vmul.f32 %v1401, 0.00390625
      %v1440 = vmul.f32 %v1406, 0.00390625
      %v1441 = vmul.f32 %v1411, 0.00390625
      %v1442 = vmul.f32 %v1416, 0.00390625
      %v1443 = vmul.f32 %v1421, 0.00390625
      %v1444 = vmul.f32 %v1426, 0.00390625
      %v1445 = vmul.f32 %v1431, 0.00390625
      %v1446 = vmul.f32 %v1436, 0.00390625
      %v1447 = vmul.f32 %v1326, %v1326
      %v1448 = vmul.f32 %v1327, %v1327
      %v1449 = vmul.f32 %v1328, %v1328
      %v1450 = vmul.f32 %v1329, %v1329
      %v1451 = vmul.f32 %v1330, %v1330
      %v1452 = vmul.f32 %v1331, %v1331
      %v1453 = vmul.f32 %v1332, %v1332
      %v1454 = vmul.f32 %v1333, %v1333
      %v1455 = vsub.f32 %v1439, %v1447
      %v1456 = vsub.f32 %v1440, %v1448
      %v1457 = vsub.f32 %v1441, %v1449
      %v1458 = vsub.f32 %v1442, %v1450
      %v1459 = vsub.f32 %v1443, %v1451
      %v1460 = vsub.f32 %v1444, %v1452
      %v1461 = vsub.f32 %v1445, %v1453
      %v1462 = vsub.f32 %v1446, %v1454
      %v1463 = vadd.f32 %v1455, 1e-05
      %v1464 = vadd.f32 %v1456, 1e-05
      %v1465 = vadd.f32 %v1457, 1e-05
      %v1466 = vadd.f32 %v1458, 1e-05
      %v1467 = vadd.f32 %v1459, 1e-05
      %v1468 = vadd.f32 %v1460, 1e-05
      %v1469 = vadd.f32 %v1461, 1e-05
      %v1470 = vadd.f32 %v1462, 1e-05
      %v1471 = vrsqrt.pop %v1463
      %v1472 = vrsqrt.pop %v1464
      %v1473 = vrsqrt.pop %v1465
      %v1474 = vrsqrt.pop %v1466
      %v1475 = vrsqrt.pop %v1467
      %v1476 = vrsqrt.pop %v1468
      %v1477 = vrsqrt.pop %v1469
      %v1478 = vrsqrt.pop %v1470
      %1480 = vset.pattern.permute.xlu0 0
      %1481 = vperm.xlu0 %1480, %v1326
      %v1482 = vpop.permute.xlu0 %1481
      %1485 = vset.pattern.permute.xlu0 0
      %1486 = vperm.xlu0 %1485, %v1327
      %v1487 = vpop.permute.xlu0 %1486
      %1490 = vset.pattern.permute.xlu0 0
      %1491 = vperm.xlu0 %1490, %v1328
      %v1492 = vpop.permute.xlu0 %1491
      %1495 = vset.pattern.permute.xlu0 0
      %1496 = vperm.xlu0 %1495, %v1329
      %v1497 = vpop.permute.xlu0 %1496
      %1500 = vset.pattern.permute.xlu0 0
      %1501 = vperm.xlu0 %1500, %v1330
      %v1502 = vpop.permute.xlu0 %1501
      %1505 = vset.pattern.permute.xlu0 0
      %1506 = vperm.xlu0 %1505, %v1331
      %v1507 = vpop.permute.xlu0 %1506
      %1510 = vset.pattern.permute.xlu0 0
      %1511 = vperm.xlu0 %1510, %v1332
      %v1512 = vpop.permute.xlu0 %1511
      %1515 = vset.pattern.permute.xlu0 0
      %1516 = vperm.xlu0 %1515, %v1333
      %v1517 = vpop.permute.xlu0 %1516
      %v1519 = vsub.f32 %v1094, %v1482
      %v1520 = vsub.f32 %v1099, %v1487
      %v1521 = vsub.f32 %v1104, %v1492
      %v1522 = vsub.f32 %v1109, %v1497
      %v1523 = vsub.f32 %v1114, %v1502
      %v1524 = vsub.f32 %v1119, %v1507
      %v1525 = vsub.f32 %v1124, %v1512
      %v1526 = vsub.f32 %v1129, %v1517
      %1528 = vset.pattern.permute.xlu0 0
      %1529 = vperm.xlu0 %1528, %v1471
      %v1530 = vpop.permute.xlu0 %1529
      %1533 = vset.pattern.permute.xlu0 0
      %1534 = vperm.xlu0 %1533, %v1472
      %v1535 = vpop.permute.xlu0 %1534
      %1538 = vset.pattern.permute.xlu0 0
      %1539 = vperm.xlu0 %1538, %v1473
      %v1540 = vpop.permute.xlu0 %1539
      %1543 = vset.pattern.permute.xlu0 0
      %1544 = vperm.xlu0 %1543, %v1474
      %v1545 = vpop.permute.xlu0 %1544
      %1548 = vset.pattern.permute.xlu0 0
      %1549 = vperm.xlu0 %1548, %v1475
      %v1550 = vpop.permute.xlu0 %1549
      %1553 = vset.pattern.permute.xlu0 0
      %1554 = vperm.xlu0 %1553, %v1476
      %v1555 = vpop.permute.xlu0 %1554
      %1558 = vset.pattern.permute.xlu0 0
      %1559 = vperm.xlu0 %1558, %v1477
      %v1560 = vpop.permute.xlu0 %1559
      %1563 = vset.pattern.permute.xlu0 0
      %1564 = vperm.xlu0 %1563, %v1478
      %v1565 = vpop.permute.xlu0 %1564
      %v1567 = vmul.f32 %v1519, %v1530
      %v1568 = vmul.f32 %v1520, %v1535
      %v1569 = vmul.f32 %v1521, %v1540
      %v1570 = vmul.f32 %v1522, %v1545
      %v1571 = vmul.f32 %v1523, %v1550
      %v1572 = vmul.f32 %v1524, %v1555
      %v1573 = vmul.f32 %v1525, %v1560
      %v1574 = vmul.f32 %v1526, %v1565
      %1576 = vset.pattern.permute.xlu0 0
      %1577 = vperm.xlu0 %1576, %v1140
      %v1578 = vpop.permute.xlu0 %1577
      %1581 = vset.pattern.permute.xlu0 0
      %1582 = vperm.xlu0 %1581, %v1141
      %v1583 = vpop.permute.xlu0 %1582
      %1586 = vset.pattern.permute.xlu0 0
      %1587 = vperm.xlu0 %1586, %v1142
      %v1588 = vpop.permute.xlu0 %1587
      %1591 = vset.pattern.permute.xlu0 0
      %1592 = vperm.xlu0 %1591, %v1143
      %v1593 = vpop.permute.xlu0 %1592
      %1596 = vset.pattern.permute.xlu0 0
      %1597 = vperm.xlu0 %1596, %v1144
      %v1598 = vpop.permute.xlu0 %1597
      %1601 = vset.pattern.permute.xlu0 0
      %1602 = vperm.xlu0 %1601, %v1145
      %v1603 = vpop.permute.xlu0 %1602
      %1606 = vset.pattern.permute.xlu0 0
      %1607 = vperm.xlu0 %1606, %v1146
      %v1608 = vpop.permute.xlu0 %1607
      %1611 = vset.pattern.permute.xlu0 0
      %1612 = vperm.xlu0 %1611, %v1147
      %v1613 = vpop.permute.xlu0 %1612
      %v1615 = vmul.f32 %v1567, %v1578
      %v1616 = vmul.f32 %v1568, %v1583
      %v1617 = vmul.f32 %v1569, %v1588
      %v1618 = vmul.f32 %v1570, %v1593
      %v1619 = vmul.f32 %v1571, %v1598
      %v1620 = vmul.f32 %v1572, %v1603
      %v1621 = vmul.f32 %v1573, %v1608
      %v1622 = vmul.f32 %v1574, %v1613
      %1624 = vset.pattern.permute.xlu0 0
      %1625 = vperm.xlu0 %1624, %v1148
      %v1626 = vpop.permute.xlu0 %1625
      %1629 = vset.pattern.permute.xlu0 0
      %1630 = vperm.xlu0 %1629, %v1149
      %v1631 = vpop.permute.xlu0 %1630
      %1634 = vset.pattern.permute.xlu0 0
      %1635 = vperm.xlu0 %1634, %v1150
      %v1636 = vpop.permute.xlu0 %1635
      %1639 = vset.pattern.permute.xlu0 0
      %1640 = vperm.xlu0 %1639, %v1151
      %v1641 = vpop.permute.xlu0 %1640
      %1644 = vset.pattern.permute.xlu0 0
      %1645 = vperm.xlu0 %1644, %v1152
      %v1646 = vpop.permute.xlu0 %1645
      %1649 = vset.pattern.permute.xlu0 0
      %1650 = vperm.xlu0 %1649, %v1153
      %v1651 = vpop.permute.xlu0 %1650
      %1654 = vset.pattern.permute.xlu0 0
      %1655 = vperm.xlu0 %1654, %v1154
      %v1656 = vpop.permute.xlu0 %1655
      %1659 = vset.pattern.permute.xlu0 0
      %1660 = vperm.xlu0 %1659, %v1155
      %v1661 = vpop.permute.xlu0 %1660
      %v1663 = vadd.f32 %v1615, %v1626
      %v1664 = vadd.f32 %v1616, %v1631
      %v1665 = vadd.f32 %v1617, %v1636
      %v1666 = vadd.f32 %v1618, %v1641
      %v1667 = vadd.f32 %v1619, %v1646
      %v1668 = vadd.f32 %v1620, %v1651
      %v1669 = vadd.f32 %v1621, %v1656
      %v1670 = vadd.f32 %v1622, %v1661
      %v1671 = vxor.u32 %v1663, 2147483648
      %v1672 = vxor.u32 %v1664, 2147483648
      %v1673 = vxor.u32 %v1665, 2147483648
      %v1674 = vxor.u32 %v1666, 2147483648
      %v1675 = vxor.u32 %v1667, 2147483648
      %v1676 = vxor.u32 %v1668, 2147483648
      %v1677 = vxor.u32 %v1669, 2147483648
      %v1678 = vxor.u32 %v1670, 2147483648
      %v1679 = vmul.f32 %v1671, 1.442695
      %v1680 = vpow.pop %v1679
      %v1681 = vmul.f32 %v1672, 1.442695
      %v1682 = vpow.pop %v1681
      %v1683 = vmul.f32 %v1673, 1.442695
      %v1684 = vpow.pop %v1683
      %v1685 = vmul.f32 %v1674, 1.442695
      %v1686 = vpow.pop %v1685
      %v1687 = vmul.f32 %v1675, 1.442695
      %v1688 = vpow.pop %v1687
      %v1689 = vmul.f32 %v1676, 1.442695
      %v1690 = vpow.pop %v1689
      %v1691 = vmul.f32 %v1677, 1.442695
      %v1692 = vpow.pop %v1691
      %v1693 = vmul.f32 %v1678, 1.442695
      %v1694 = vpow.pop %v1693
      %v1695 = vadd.f32 %v1680, 1.0
      %v1696 = vadd.f32 %v1682, 1.0
      %v1697 = vadd.f32 %v1684, 1.0
      %v1698 = vadd.f32 %v1686, 1.0
      %v1699 = vadd.f32 %v1688, 1.0
      %v1700 = vadd.f32 %v1690, 1.0
      %v1701 = vadd.f32 %v1692, 1.0
      %v1702 = vadd.f32 %v1694, 1.0
      %v1703 = vrcp.pop %v1695
      %v1704 = vmul.f32 1.0, %v1703
      %v1705 = vrcp.pop %v1696
      %v1706 = vmul.f32 1.0, %v1705
      %v1707 = vrcp.pop %v1697
      %v1708 = vmul.f32 1.0, %v1707
      %v1709 = vrcp.pop %v1698
      %v1710 = vmul.f32 1.0, %v1709
      %v1711 = vrcp.pop %v1699
      %v1712 = vmul.f32 1.0, %v1711
      %v1713 = vrcp.pop %v1700
      %v1714 = vmul.f32 1.0, %v1713
      %v1715 = vrcp.pop %v1701
      %v1716 = vmul.f32 1.0, %v1715
      %v1717 = vrcp.pop %v1702
      %v1718 = vmul.f32 1.0, %v1717
      %v1719 = vmul.f32 %v1663, %v1704
      %v1720 = vmul.f32 %v1664, %v1706
      %v1721 = vmul.f32 %v1665, %v1708
      %v1722 = vmul.f32 %v1666, %v1710
      %v1723 = vmul.f32 %v1667, %v1712
      %v1724 = vmul.f32 %v1668, %v1714
      %v1725 = vmul.f32 %v1669, %v1716
      %v1726 = vmul.f32 %v1670, %v1718
      %v1727 = vld [vmem:[%s8] sm:$0xff]
      %v1728 = vld [vmem:[%s8 + $0x8] sm:$0xff]
      %v1729 = vld [vmem:[%s8 + $0x10] sm:$0xff]
      %v1730 = vld [vmem:[%s8 + $0x18] sm:$0xff]
      %v1731 = vld [vmem:[%s8 + $0x20] sm:$0xff]
      %v1732 = vld [vmem:[%s8 + $0x28] sm:$0xff]
      %v1733 = vld [vmem:[%s8 + $0x30] sm:$0xff]
      %v1734 = vld [vmem:[%s8 + $0x38] sm:$0xff]
      %v1735 = vld [vmem:[%s8 + $0x40] sm:$0xff]
      %v1736 = vld [vmem:[%s8 + $0x48] sm:$0xff]
      %v1737 = vld [vmem:[%s8 + $0x50] sm:$0xff]
      %v1738 = vld [vmem:[%s8 + $0x58] sm:$0xff]
      %v1739 = vld [vmem:[%s8 + $0x60] sm:$0xff]
      %v1740 = vld [vmem:[%s8 + $0x68] sm:$0xff]
      %v1741 = vld [vmem:[%s8 + $0x70] sm:$0xff]
      %v1742 = vld [vmem:[%s8 + $0x78] sm:$0xff]
      %1743 = vrot.lane.b32.xlu0 %v1719, 1
      %v1744 = vpop.permute.xlu0 %1743
      %1745 = vrot.lane.b32.xlu0 %v1720, 1
      %v1746 = vpop.permute.xlu0 %1745
      %1747 = vrot.lane.b32.xlu0 %v1721, 1
      %v1748 = vpop.permute.xlu0 %1747
      %1749 = vrot.lane.b32.xlu0 %v1722, 1
      %v1750 = vpop.permute.xlu0 %1749
      %1751 = vrot.lane.b32.xlu0 %v1723, 1
      %v1752 = vpop.permute.xlu0 %1751
      %1753 = vrot.lane.b32.xlu0 %v1724, 1
      %v1754 = vpop.permute.xlu0 %1753
      %1755 = vrot.lane.b32.xlu0 %v1725, 1
      %v1756 = vpop.permute.xlu0 %1755
      %1757 = vrot.lane.b32.xlu0 %v1726, 1
      %v1758 = vpop.permute.xlu0 %1757
      %v1759 = vsel %vm976, 0.0, %v1744
      %v1760 = vsel %vm976, 0.0, %v1746
      %v1761 = vsel %vm976, 0.0, %v1748
      %v1762 = vsel %vm976, 0.0, %v1750
      %v1763 = vsel %vm976, 0.0, %v1752
      %v1764 = vsel %vm976, 0.0, %v1754
      %v1765 = vsel %vm976, 0.0, %v1756
      %v1766 = vsel %vm976, 0.0, %v1758
      %1767 = vrot.lane.b32.xlu0 %v1719, 127
      %v1768 = vpop.permute.xlu0 %1767
      %1769 = vrot.lane.b32.xlu0 %v1720, 127
      %v1770 = vpop.permute.xlu0 %1769
      %1771 = vrot.lane.b32.xlu0 %v1721, 127
      %v1772 = vpop.permute.xlu0 %1771
      %1773 = vrot.lane.b32.xlu0 %v1722, 127
      %v1774 = vpop.permute.xlu0 %1773
      %1775 = vrot.lane.b32.xlu0 %v1723, 127
      %v1776 = vpop.permute.xlu0 %1775
      %1777 = vrot.lane.b32.xlu0 %v1724, 127
      %v1778 = vpop.permute.xlu0 %1777
      %1779 = vrot.lane.b32.xlu0 %v1725, 127
      %v1780 = vpop.permute.xlu0 %1779
      %1781 = vrot.lane.b32.xlu0 %v1726, 127
      %v1782 = vpop.permute.xlu0 %1781
      %v1783 = vsel %vm989, 0.0, %v1768
      %v1784 = vsel %vm989, 0.0, %v1770
      %v1785 = vsel %vm989, 0.0, %v1772
      %v1786 = vsel %vm989, 0.0, %v1774
      %v1787 = vsel %vm989, 0.0, %v1776
      %v1788 = vsel %vm989, 0.0, %v1778
      %v1789 = vsel %vm989, 0.0, %v1780
      %v1790 = vsel %vm989, 0.0, %v1782
      %v1792 = vsel %vm1196, %v1728, 0
      %v1795 = vsel %vm1196, %v1730, 0
      %v1798 = vsel %vm1196, %v1732, 0
      %v1801 = vsel %vm1196, %v1734, 0
      %v1804 = vsel %vm1196, %v1736, 0
      %v1807 = vsel %vm1196, %v1738, 0
      %v1810 = vsel %vm1196, %v1740, 0
      %v1813 = vsel %vm1196, %v1742, 0
      %1815 = vmatprep.subr.mxu0 0.0
      %1816 = vmatpush1.msra.mxu0 %v1726
      %1817 = vmatprep.subr.mxu0 0.0
      %1818 = vmatpush1.msra.mxu0 %v1725
      %1819 = vmatprep.subr.mxu0 0.0
      %1820 = vmatpush1.msra.mxu0 %v1724
      %1821 = vmatprep.subr.mxu0 0.0
      %1822 = vmatpush1.msra.mxu0 %v1723
      %1823 = vmatprep.subr.mxu0 0.0
      %1824 = vmatpush1.msra.mxu0 %v1722
      %1825 = vmatprep.subr.mxu0 0.0
      %1826 = vmatpush1.msra.mxu0 %v1721
      %1827 = vmatprep.subr.mxu0 0.0
      %1828 = vmatpush1.msra.mxu0 %v1720
      %1829 = vmatprep.subr.mxu0 0.0
      %1830 = vmatpush1.msra.mxu0 %v1719
      %1831 = vmatprep.subr.mxu0 0.0
      %1832 = vmatpush1.msra.mxu0 %v1766
      %1833 = vmatprep.subr.mxu0 0.0
      %1834 = vmatpush1.msra.mxu0 %v1765
      %1835 = vmatprep.subr.mxu0 0.0
      %1836 = vmatpush1.msra.mxu0 %v1764
      %1837 = vmatprep.subr.mxu0 0.0
      %1838 = vmatpush1.msra.mxu0 %v1763
      %1839 = vmatprep.subr.mxu0 0.0
      %1840 = vmatpush1.msra.mxu0 %v1762
      %1841 = vmatprep.subr.mxu0 0.0
      %1842 = vmatpush1.msra.mxu0 %v1761
      %1843 = vmatprep.subr.mxu0 0.0
      %1844 = vmatpush1.msra.mxu0 %v1760
      %1845 = vmatprep.subr.mxu0 0.0
      %1846 = vmatpush1.msra.mxu0 %v1759
      %1847 = vmatprep.subr.mxu0 0.0
      %1848 = vmatpush2.msra.mxu0 0.0
      %1849 = vmatprep.subr.mxu0 0.0
      %1850 = vmatpush2.msra.mxu0 0.0
      %1851 = vmatprep.subr.mxu0 0.0
      %1852 = vmatpush2.msra.mxu0 0.0
      %1853 = vmatprep.subr.mxu0 0.0
      %1854 = vmatpush2.msra.mxu0 0.0
      %1855 = vmatprep.subr.mxu0 0.0
      %1856 = vmatpush2.msra.mxu0 0.0
      %1857 = vmatprep.subr.mxu0 0.0
      %1858 = vmatpush2.msra.mxu0 0.0
      %1859 = vmatprep.subr.mxu0 0.0
      %1860 = vmatpush2.msra.mxu0 0.0
      %1861 = vmatprep.subr.mxu0 0.0
      %1862 = vmatpush2.msra.mxu0 0.0
      %1863 = vmatprep.subr.mxu0 0.0
      %1864 = vmatpush2.msra.mxu0 %v1790
      %1865 = vmatprep.subr.mxu0 0.0
      %1866 = vmatpush2.msra.mxu0 %v1789
      %1867 = vmatprep.subr.mxu0 0.0
      %1868 = vmatpush2.msra.mxu0 %v1788
      %1869 = vmatprep.subr.mxu0 0.0
      %1870 = vmatpush2.msra.mxu0 %v1787
      %1871 = vmatprep.subr.mxu0 0.0
      %1872 = vmatpush2.msra.mxu0 %v1786
      %1873 = vmatprep.subr.mxu0 0.0
      %1874 = vmatpush2.msra.mxu0 %v1785
      %1875 = vmatprep.subr.mxu0 0.0
      %1876 = vmatpush2.msra.mxu0 %v1784
      %1877 = vmatprep.subr.mxu0 0.0
      %1878 = vmatpush2.msra.mxu0 %v1783
      %1879 = vmatprep.mubr.f32.mxu0 %v1792
      %1880 = vmatmul.mubr.f32.gmra.mxu0 %v1727
      %v1881 = vpop.f32.mrf.mxu0
      %v1882 = vadd.f32 %v566, %v1881
      %v1883 = vpop.f32.mrf.mxu0
      %1884 = vmatprep.mubr.f32.mxu0 %v1795
      %1885 = vmatmul.mubr.f32.gmra.mxu0 %v1729
      %v1886 = vpop.f32.mrf.mxu0
      %v1887 = vadd.f32 %v571, %v1886
      %v1888 = vpop.f32.mrf.mxu0
      %1889 = vmatprep.mubr.f32.mxu0 %v1798
      %1890 = vmatmul.mubr.f32.gmra.mxu0 %v1731
      %v1891 = vpop.f32.mrf.mxu0
      %v1892 = vadd.f32 %v576, %v1891
      %v1893 = vpop.f32.mrf.mxu0
      %1894 = vmatprep.mubr.f32.mxu0 %v1801
      %1895 = vmatmul.mubr.f32.gmra.mxu0 %v1733
      %v1896 = vpop.f32.mrf.mxu0
      %v1897 = vadd.f32 %v581, %v1896
      %v1898 = vpop.f32.mrf.mxu0
      %1899 = vmatprep.mubr.f32.mxu0 %v1804
      %1900 = vmatmul.mubr.f32.gmra.mxu0 %v1735
      %v1901 = vpop.f32.mrf.mxu0
      %v1902 = vadd.f32 %v586, %v1901
      %v1903 = vpop.f32.mrf.mxu0
      %1904 = vmatprep.mubr.f32.mxu0 %v1807
      %1905 = vmatmul.mubr.f32.gmra.mxu0 %v1737
      %v1906 = vpop.f32.mrf.mxu0
      %v1907 = vadd.f32 %v591, %v1906
      %v1908 = vpop.f32.mrf.mxu0
      %1909 = vmatprep.mubr.f32.mxu0 %v1810
      %1910 = vmatmul.mubr.f32.gmra.mxu0 %v1739
      %v1911 = vpop.f32.mrf.mxu0
      %v1912 = vadd.f32 %v596, %v1911
      %v1913 = vpop.f32.mrf.mxu0
      %1914 = vmatprep.mubr.f32.mxu0 %v1813
      %1915 = vmatmul.mubr.f32.gmra.mxu0 %v1741
      %v1916 = vpop.f32.mrf.mxu0
      %v1917 = vadd.f32 %v601, %v1916
      %v1918 = vpop.f32.mrf.mxu0
      %1919 = vdwg.mxu0
      %v1920 = vld [vmem:[%s11] sm:$0xff]
      %v1921 = vld [vmem:[%s11 + $0x8] sm:$0xff]
      %v1922 = vld [vmem:[%s11 + $0x10] sm:$0xff]
      %v1923 = vld [vmem:[%s11 + $0x18] sm:$0xff]
      %v1924 = vld [vmem:[%s11 + $0x20] sm:$0xff]
      %v1925 = vld [vmem:[%s11 + $0x28] sm:$0xff]
      %v1926 = vld [vmem:[%s11 + $0x30] sm:$0xff]
      %v1927 = vld [vmem:[%s11 + $0x38] sm:$0xff]
      %v1928 = vld [vmem:[%s11 + $0x40] sm:$0xff]
      %v1929 = vld [vmem:[%s11 + $0x48] sm:$0xff]
      %v1930 = vld [vmem:[%s11 + $0x50] sm:$0xff]
      %v1931 = vld [vmem:[%s11 + $0x58] sm:$0xff]
      %v1932 = vld [vmem:[%s11 + $0x60] sm:$0xff]
      %v1933 = vld [vmem:[%s11 + $0x68] sm:$0xff]
      %v1934 = vld [vmem:[%s11 + $0x70] sm:$0xff]
      %v1935 = vld [vmem:[%s11 + $0x78] sm:$0xff]
      %1936 = vmatprep.subr.mxu0 0.0
      %1937 = vmatpush1.msra.mxu0 %v1935
      %1938 = vmatprep.subr.mxu0 0.0
      %1939 = vmatpush1.msra.mxu0 %v1934
      %1940 = vmatprep.subr.mxu0 0.0
      %1941 = vmatpush1.msra.mxu0 %v1933
      %1942 = vmatprep.subr.mxu0 0.0
      %1943 = vmatpush1.msra.mxu0 %v1932
      %1944 = vmatprep.subr.mxu0 0.0
      %1945 = vmatpush1.msra.mxu0 %v1931
      %1946 = vmatprep.subr.mxu0 0.0
      %1947 = vmatpush1.msra.mxu0 %v1930
      %1948 = vmatprep.subr.mxu0 0.0
      %1949 = vmatpush1.msra.mxu0 %v1929
      %1950 = vmatprep.subr.mxu0 0.0
      %1951 = vmatpush1.msra.mxu0 %v1928
      %1952 = vmatprep.subr.mxu0 0.0
      %1953 = vmatpush1.msra.mxu0 %v1927
      %1954 = vmatprep.subr.mxu0 0.0
      %1955 = vmatpush1.msra.mxu0 %v1926
      %1956 = vmatprep.subr.mxu0 0.0
      %1957 = vmatpush1.msra.mxu0 %v1925
      %1958 = vmatprep.subr.mxu0 0.0
      %1959 = vmatpush1.msra.mxu0 %v1924
      %1960 = vmatprep.subr.mxu0 0.0
      %1961 = vmatpush1.msra.mxu0 %v1923
      %1962 = vmatprep.subr.mxu0 0.0
      %1963 = vmatpush1.msra.mxu0 %v1922
      %1964 = vmatprep.subr.mxu0 0.0
      %1965 = vmatpush1.msra.mxu0 %v1921
      %1966 = vmatprep.subr.mxu0 0.0
      %1967 = vmatpush1.msra.mxu0 %v1920
      %1968 = vmatprep.subr.mxu0 0.0
      %1969 = vmatpush2.msra.mxu0 0.0
      %1970 = vmatprep.subr.mxu0 0.0
      %1971 = vmatpush2.msra.mxu0 0.0
      %1972 = vmatprep.subr.mxu0 0.0
      %1973 = vmatpush2.msra.mxu0 0.0
      %1974 = vmatprep.subr.mxu0 0.0
      %1975 = vmatpush2.msra.mxu0 0.0
      %1976 = vmatprep.subr.mxu0 0.0
      %1977 = vmatpush2.msra.mxu0 0.0
      %1978 = vmatprep.subr.mxu0 0.0
      %1979 = vmatpush2.msra.mxu0 0.0
      %1980 = vmatprep.subr.mxu0 0.0
      %1981 = vmatpush2.msra.mxu0 0.0
      %1982 = vmatprep.subr.mxu0 0.0
      %1983 = vmatpush2.msra.mxu0 0.0
      %1984 = vmatprep.subr.mxu0 0.0
      %1985 = vmatpush2.msra.mxu0 0.0
      %1986 = vmatprep.subr.mxu0 0.0
      %1987 = vmatpush2.msra.mxu0 0.0
      %1988 = vmatprep.subr.mxu0 0.0
      %1989 = vmatpush2.msra.mxu0 0.0
      %1990 = vmatprep.subr.mxu0 0.0
      %1991 = vmatpush2.msra.mxu0 0.0
      %1992 = vmatprep.subr.mxu0 0.0
      %1993 = vmatpush2.msra.mxu0 0.0
      %1994 = vmatprep.subr.mxu0 0.0
      %1995 = vmatpush2.msra.mxu0 0.0
      %1996 = vmatprep.subr.mxu0 0.0
      %1997 = vmatpush2.msra.mxu0 0.0
      %1998 = vmatprep.subr.mxu0 0.0
      %1999 = vmatpush2.msra.mxu0 0.0
      %2000 = vmatprep.mubr.f32.mxu0 0.0
      %2001 = vmatmul.mubr.f32.gmra.mxu0 %v1882
      %v2002 = vpop.f32.mrf.mxu0
      %v2003 = vadd.f32 0.0, %v2002
      %v2004 = vpop.f32.mrf.mxu0
      %2005 = vmatprep.mubr.f32.mxu0 0.0
      %2006 = vmatmul.mubr.f32.gmra.mxu0 %v1887
      %v2007 = vpop.f32.mrf.mxu0
      %v2008 = vadd.f32 0.0, %v2007
      %v2009 = vpop.f32.mrf.mxu0
      %2010 = vmatprep.mubr.f32.mxu0 0.0
      %2011 = vmatmul.mubr.f32.gmra.mxu0 %v1892
      %v2012 = vpop.f32.mrf.mxu0
      %v2013 = vadd.f32 0.0, %v2012
      %v2014 = vpop.f32.mrf.mxu0
      %2015 = vmatprep.mubr.f32.mxu0 0.0
      %2016 = vmatmul.mubr.f32.gmra.mxu0 %v1897
      %v2017 = vpop.f32.mrf.mxu0
      %v2018 = vadd.f32 0.0, %v2017
      %v2019 = vpop.f32.mrf.mxu0
      %2020 = vmatprep.mubr.f32.mxu0 0.0
      %2021 = vmatmul.mubr.f32.gmra.mxu0 %v1902
      %v2022 = vpop.f32.mrf.mxu0
      %v2023 = vadd.f32 0.0, %v2022
      %v2024 = vpop.f32.mrf.mxu0
      %2025 = vmatprep.mubr.f32.mxu0 0.0
      %2026 = vmatmul.mubr.f32.gmra.mxu0 %v1907
      %v2027 = vpop.f32.mrf.mxu0
      %v2028 = vadd.f32 0.0, %v2027
      %v2029 = vpop.f32.mrf.mxu0
      %2030 = vmatprep.mubr.f32.mxu0 0.0
      %2031 = vmatmul.mubr.f32.gmra.mxu0 %v1912
      %v2032 = vpop.f32.mrf.mxu0
      %v2033 = vadd.f32 0.0, %v2032
      %v2034 = vpop.f32.mrf.mxu0
      %2035 = vmatprep.mubr.f32.mxu0 0.0
      %2036 = vmatmul.mubr.f32.gmra.mxu0 %v1917
      %v2037 = vpop.f32.mrf.mxu0
      %v2038 = vadd.f32 0.0, %v2037
      %v2039 = vpop.f32.mrf.mxu0
      %2040 = vdwg.mxu0
      %2041 = vst.msk [vmem:[%s413] sm:$0xff] %vm474, %v2003
      %2042 = vst.msk [vmem:[%s413 + $0x8] sm:$0xff] %vm474, %v2008
      %2043 = vst.msk [vmem:[%s413 + $0x10] sm:$0xff] %vm474, %v2013
      %2044 = vst.msk [vmem:[%s413 + $0x18] sm:$0xff] %vm474, %v2018
      %2045 = vst.msk [vmem:[%s413 + $0x20] sm:$0xff] %vm474, %v2023
      %2046 = vst.msk [vmem:[%s413 + $0x28] sm:$0xff] %vm474, %v2028
      %2047 = vst.msk [vmem:[%s413 + $0x30] sm:$0xff] %vm474, %v2033
      %2048 = vst.msk [vmem:[%s413 + $0x38] sm:$0xff] %vm474, %v2038
      %p2049 = scmp.lt.s32.totalorder %s23, 1
      %s2050 = scalar_select %p2049, %s23, 1
      %s2051 = smul.addr %s2050, 8
      %s2052 = smul.addr %s2051, 8
      %s2053 = scalar_lea.vmem %s12, %s2052
      // Predicated region
      $region69: #{tpu_custom_call.1} parent=67 // pred_check
        %p2054 = pneg %p298
      $region70: #{tpu_custom_call.1} parent=67 // pred_check_branch
        %2056 = sbr.rel (%p2054) target = $region72
      $region71: #{tpu_custom_call.1} parent=67 // pred_region
        _
      $region72: #{tpu_custom_call.1} parent=67 // pred_fallthru
        _
    $region68: #{tpu_custom_call.1} parent=5 // pred_fallthru
      _
    %p2057 = scmp.le.s32.totalorder 2, %s18
    // Predicated region
    $region73: #{tpu_custom_call.1} parent=5 // pred_check
      %p2058 = pneg %p2057
    $region74: #{tpu_custom_call.1} parent=5 // pred_check_branch
      %2060 = sbr.rel (%p2058) target = $region76
    $region75: #{tpu_custom_call.1} parent=5 // pred_region
      %s2061 = ssub.s32 %s18, 2
      // Predicated region
      $region77: #{tpu_custom_call.1} parent=75 // pred_check
        %p2062 = pneg %p304
      $region78: #{tpu_custom_call.1} parent=75 // pred_check_branch
        %2064 = sbr.rel (%p2062) target = $region80
      $region79: #{tpu_custom_call.1} parent=75 // pred_region
        %p2065 = scmp.lt.s32.totalorder %s24, 1
        %s2066 = scalar_select %p2065, %s24, 1
        %s2067 = smul.addr %s2066, 8
        %s2068 = smul.addr %s2067, 8
        %s2069 = scalar_lea.vmem %s12, %s2068
      $region80: #{tpu_custom_call.1} parent=75 // pred_fallthru
        _
    $region76: #{tpu_custom_call.1} parent=5 // pred_fallthru
      _
  $region6: #{tpu_custom_call.1} parent=0 // loop_footer
    %s22 = sadd.s32 1, %s18
  $region7: #{tpu_custom_call.1} parent=0 // loop_footer_branch
    %17 = sbr.rel target = $region3
  $region8: #{tpu_custom_call.1} parent=0 // loop_exit
    _

</llo_original>
